<compile_context>
chip_gen: v7x
topology: tpu7x:2x2x1
jax: 0.10.0
libtpu: 0.0.40
codegen_flags: <defaults>
</compile_context>

<pallas_src>
import functools

import jax
import jax.numpy as jnp
from jax import lax
from jax.experimental import pallas as pl
from jax.experimental.pallas import tpu as pltpu


def _lstm_kernel(B, T, I, H, O,
                 x_ref,      # (T*B, I)  time-major, flattened
                 wih0_ref,   # (I, 4H)   layer-0 input weights (transposed, gate-reordered)
                 whh0_ref,   # (H, 4H)   layer-0 hidden weights (transposed, gate-reordered)
                 b0_ref,     # (1, 4H)   layer-0 combined bias (reordered)
                 w1_ref,     # (2H, 4H)  layer-1 stacked [wih1; whh1] (transposed, reordered)
                 b1_ref,     # (1, 4H)   layer-1 combined bias (reordered)
                 wfc_ref,    # (H, O)    fc weight (transposed)
                 bfc_ref,    # (1, O)    fc bias
                 out_ref):   # (B, O)
    H3 = 3 * H

    whh0 = whh0_ref[...]
    w1 = w1_ref[...]

    # ---- hoisted layer-0 input projection for ALL timesteps (bias folded) ----
    # (T*B, I) @ (I, 4H) -> (T*B, 4H); single MXU pass instead of T K=1 passes
    # on the serial recurrence path.
    xz = (jnp.dot(x_ref[...], wih0_ref[...], preferred_element_type=jnp.float32)
          + b0_ref[...])

    # Pre-broadcast layer-1 bias once (broadcast_in_dim is not CSE'd).
    b1 = jnp.broadcast_to(b1_ref[...], (B, 4 * H))

    def gates_to_hc(gates, c):
        # Gate layout after host-side reorder: [ i | f | o | g ].
        s = jax.nn.sigmoid(gates[:, :H3])          # one EUP pass for i, f, o
        i_g = s[:, 0:H]
        f_g = s[:, H:2 * H]
        o_g = s[:, 2 * H:H3]
        g_g = jnp.tanh(gates[:, H3:])
        c_new = f_g * c + i_g * g_g
        h_new = o_g * jnp.tanh(c_new)
        return h_new, c_new

    zeros = jnp.zeros((B, H), jnp.float32)
    h0, c0 = zeros, zeros
    h1, c1 = zeros, zeros

    # ---- single fused, fully-unrolled time loop (T is small & static) ----
    for t in range(T):
        # layer 0: only the hidden matmul remains on the recurrent path.
        g0 = (jnp.dot(h0, whh0, preferred_element_type=jnp.float32)
              + xz[t * B:(t + 1) * B, :])
        h0, c0 = gates_to_hc(g0, c0)

        # layer 1: one fused matmul  [h0_t, h1_{t-1}] @ [wih1; whh1].
        lhs1 = jnp.concatenate([h0, h1], axis=-1)          # (B, 2H)
        g1 = jnp.dot(lhs1, w1, preferred_element_type=jnp.float32) + b1
        h1, c1 = gates_to_hc(g1, c1)

    # ---- fc on the last timestep of the top layer ----
    # (O = 1 -> masked partial store; negligible at this width.)
    out_ref[...] = (jnp.dot(h1, wfc_ref[...], preferred_element_type=jnp.float32)
                    + bfc_ref[...])


def lstm_model_pallas(x, params):
    """x: (B, T, I) batch_first float32. Returns (B, O)."""
    B, T, I = x.shape
    H = params["whh0"].shape[1]
    O = params["wfc"].shape[0]

    # Time-major + flatten so the layer-0 input projection for all T steps is
    # a single matmul inside the kernel. (Trivial at these shapes; do it at
    # data-prep time if B/T/I grow.)
    x_tm = jnp.transpose(x, (1, 0, 2)).reshape(T * B, I)

    # Gate-column permutation (i, f, g, o) -> (i, f, o, g): puts the three
    # sigmoid gates contiguous. Applied consistently to weights AND biases.
    perm = jnp.concatenate([jnp.arange(0, 2 * H),
                            jnp.arange(3 * H, 4 * H),
                            jnp.arange(2 * H, 3 * H)])

    def reorder(w_t):                   # w_t: (*, 4H)
        return w_t[:, perm]

    wih0_t = reorder(params["wih0"].T)                                  # (I, 4H)
    whh0_t = reorder(params["whh0"].T)                                  # (H, 4H)
    b0 = reorder((params["bih0"] + params["bhh0"]).reshape(1, 4 * H))   # (1, 4H)
    w1 = reorder(jnp.concatenate([params["wih1"].T,
                                  params["whh1"].T], axis=0))           # (2H, 4H)
    b1 = reorder((params["bih1"] + params["bhh1"]).reshape(1, 4 * H))   # (1, 4H)
    wfc_t = params["wfc"].T                                             # (H, O)
    bfc = params["bfc"].reshape(1, O)                                   # (1, O)

    kernel = functools.partial(_lstm_kernel, B, T, I, H, O)
    vmem = pl.BlockSpec(memory_space=pltpu.MemorySpace.VMEM)
    return pl.pallas_call(
        kernel,
        out_shape=jax.ShapeDtypeStruct((B, O), jnp.float32),
        in_specs=[vmem] * 8,
        out_specs=vmem,
    )(x_tm, wih0_t, whh0_t, b0, w1, b1, wfc_t, bfc)


def lstm_model_ref(x, params):
    """Pure-JAX reference (mirrors torch.nn.LSTM + Linear forward)."""
    B, T, I = x.shape
    H = params["whh0"].shape[1]

    def run_layer(seq, wih, whh, bih, bhh):
        def step(carry, x_t):
            h, c = carry
            gates = x_t @ wih.T + bih + h @ whh.T + bhh
            i_g = jax.nn.sigmoid(gates[:, 0 * H:1 * H])
            f_g = jax.nn.sigmoid(gates[:, 1 * H:2 * H])
            g_g = jnp.tanh(gates[:, 2 * H:3 * H])
            o_g = jax.nn.sigmoid(gates[:, 3 * H:4 * H])
            c = f_g * c + i_g * g_g
            h = o_g * jnp.tanh(c)
            return (h, c), h

        z = jnp.zeros((B, H), jnp.float32)
        (_, _), hs = lax.scan(step, (z, z), jnp.transpose(seq, (1, 0, 2)))
        return jnp.transpose(hs, (1, 0, 2))  # (B, T, H)

    h0 = run_layer(x, params["wih0"], params["whh0"],
                   params["bih0"], params["bhh0"])
    h1 = run_layer(h0, params["wih1"], params["whh1"],
                   params["bih1"], params["bhh1"])
    return h1[:, -1, :] @ params["wfc"].T + params["bfc"]


def init_params(key, input_size, hidden_size, output_size):
    H = hidden_size
    bound = 1.0 / jnp.sqrt(H)
    shapes = {
        "wih0": (4 * H, input_size),
        "whh0": (4 * H, H),
        "bih0": (4 * H,),
        "bhh0": (4 * H,),
        "wih1": (4 * H, H),
        "whh1": (4 * H, H),
        "bih1": (4 * H,),
        "bhh1": (4 * H,),
        "wfc": (output_size, H),
        "bfc": (output_size,),
    }
    params = {}
    keys = jax.random.split(key, len(shapes))
    for k, (name, shp) in zip(keys, shapes.items()):
        params[name] = jax.random.uniform(k, shp, jnp.float32, -bound, bound)
    return params


if __name__ == "__main__":
    # Small shapes consistent with the module: x is (batch, seq, input_size=1).
    B, T, I, H, O = 2, 8, 1, 32, 1

    key = jax.random.PRNGKey(0)
    kx, kp = jax.random.split(key)
    x = jax.random.normal(kx, (B, T, I), jnp.float32)
    params = init_params(kp, I, H, O)

    out = lstm_model_pallas(x, params)
    out = jax.block_until_ready(out)

    ref = lstm_model_ref(x, params)
    assert out.shape == (B, O), out.shape
    assert jnp.allclose(out, ref, atol=1e-5, rtol=1e-5), (out, ref)

    print("KERNEL_OK")
</pallas_src>

<mosaic_0001>
module attributes {stable_mosaic.version = 11 : i64} {
  func.func @_lstm_kernel(%arg0: memref<16x1xf32, #tpu.memory_space<vmem>>, %arg1: memref<1x128xf32, #tpu.memory_space<vmem>>, %arg2: memref<32x128xf32, #tpu.memory_space<vmem>>, %arg3: memref<1x128xf32, #tpu.memory_space<vmem>>, %arg4: memref<64x128xf32, #tpu.memory_space<vmem>>, %arg5: memref<1x128xf32, #tpu.memory_space<vmem>>, %arg6: memref<32x1xf32, #tpu.memory_space<vmem>>, %arg7: memref<1x1xf32, #tpu.memory_space<vmem>>, %arg8: memref<2x1xf32, #tpu.memory_space<vmem>>) attributes {dimension_semantics = [], scalar_prefetch = 0 : i64, scratch_operands = 0 : i64, tpu.core_type = #tpu.core_type<tc>} {
    %c0 = arith.constant 0 : index
    %c0_0 = arith.constant 0 : index
    %0 = vector.load %arg2[%c0, %c0_0] : memref<32x128xf32, #tpu.memory_space<vmem>>, vector<32x128xf32>
    %c0_1 = arith.constant 0 : index
    %c0_2 = arith.constant 0 : index
    %1 = vector.load %arg4[%c0_1, %c0_2] : memref<64x128xf32, #tpu.memory_space<vmem>>, vector<64x128xf32>
    %c0_3 = arith.constant 0 : index
    %c0_4 = arith.constant 0 : index
    %2 = vector.load %arg0[%c0_3, %c0_4] : memref<16x1xf32, #tpu.memory_space<vmem>>, vector<16x1xf32>
    %c0_5 = arith.constant 0 : index
    %c0_6 = arith.constant 0 : index
    %3 = vector.load %arg1[%c0_5, %c0_6] : memref<1x128xf32, #tpu.memory_space<vmem>>, vector<1x128xf32>
    %cst = arith.constant dense<0.000000e+00> : vector<16x128xf32>
    %4 = tpu.matmul %2, %3, %cst {dimension_numbers = #tpu.dot_dimension_numbers<[1], [0], [0], [1], [0, 0, 1, 1], [], []>} : vector<16x1xf32>, vector<1x128xf32>, vector<16x128xf32> -> vector<16x128xf32>
    %c0_7 = arith.constant 0 : index
    %c0_8 = arith.constant 0 : index
    %5 = vector.load %arg3[%c0_7, %c0_8] : memref<1x128xf32, #tpu.memory_space<vmem>>, vector<1x128xf32>
    %6 = vector.broadcast %5 : vector<1x128xf32> to vector<16x128xf32>
    %7 = arith.addf %4, %6 : vector<16x128xf32>
    %c0_9 = arith.constant 0 : index
    %c0_10 = arith.constant 0 : index
    %8 = vector.load %arg5[%c0_9, %c0_10] : memref<1x128xf32, #tpu.memory_space<vmem>>, vector<1x128xf32>
    %9 = vector.shape_cast %8 : vector<1x128xf32> to vector<1x128xf32>
    %10 = vector.broadcast %9 : vector<1x128xf32> to vector<2x128xf32>
    %cst_11 = arith.constant 0.000000e+00 : f32
    %11 = vector.broadcast %cst_11 : f32 to vector<2x32xf32>
    %cst_12 = arith.constant dense<0.000000e+00> : vector<2x128xf32>
    %12 = tpu.matmul %11, %0, %cst_12 {dimension_numbers = #tpu.dot_dimension_numbers<[1], [0], [0], [1], [0, 0, 1, 1], [], []>} : vector<2x32xf32>, vector<32x128xf32>, vector<2x128xf32> -> vector<2x128xf32>
    %13 = vector.extract_strided_slice %7 {offsets = [0, 0], sizes = [2, 128], strides = [1, 1]} : vector<16x128xf32> to vector<2x128xf32>
    %14 = arith.addf %12, %13 : vector<2x128xf32>
    %15 = vector.extract_strided_slice %14 {offsets = [0, 0], sizes = [2, 96], strides = [1, 1]} : vector<2x128xf32> to vector<2x96xf32>
    %16 = arith.negf %15 : vector<2x96xf32>
    %17 = math.exp %16 : vector<2x96xf32>
    %cst_13 = arith.constant 1.000000e+00 : f32
    %18 = vector.broadcast %cst_13 : f32 to vector<2x96xf32>
    %19 = arith.addf %18, %17 : vector<2x96xf32>
    %20 = arith.divf %18, %19 : vector<2x96xf32>
    %21 = vector.extract_strided_slice %20 {offsets = [0, 0], sizes = [2, 32], strides = [1, 1]} : vector<2x96xf32> to vector<2x32xf32>
    %22 = vector.extract_strided_slice %20 {offsets = [0, 32], sizes = [2, 32], strides = [1, 1]} : vector<2x96xf32> to vector<2x32xf32>
    %23 = vector.extract_strided_slice %20 {offsets = [0, 64], sizes = [2, 32], strides = [1, 1]} : vector<2x96xf32> to vector<2x32xf32>
    %24 = vector.extract_strided_slice %14 {offsets = [0, 96], sizes = [2, 32], strides = [1, 1]} : vector<2x128xf32> to vector<2x32xf32>
    %25 = math.tanh %24 : vector<2x32xf32>
    %26 = arith.mulf %22, %11 : vector<2x32xf32>
    %27 = arith.mulf %21, %25 : vector<2x32xf32>
    %28 = arith.addf %26, %27 : vector<2x32xf32>
    %29 = math.tanh %28 : vector<2x32xf32>
    %30 = arith.mulf %23, %29 : vector<2x32xf32>
    %31 = tpu.concatenate %30, %11 in 1 : vector<2x32xf32>, vector<2x32xf32> -> vector<2x64xf32>
    %cst_14 = arith.constant dense<0.000000e+00> : vector<2x128xf32>
    %32 = tpu.matmul %31, %1, %cst_14 {dimension_numbers = #tpu.dot_dimension_numbers<[1], [0], [0], [1], [0, 0, 1, 1], [], []>} : vector<2x64xf32>, vector<64x128xf32>, vector<2x128xf32> -> vector<2x128xf32>
    %33 = arith.addf %32, %10 : vector<2x128xf32>
    %34 = vector.extract_strided_slice %33 {offsets = [0, 0], sizes = [2, 96], strides = [1, 1]} : vector<2x128xf32> to vector<2x96xf32>
    %35 = arith.negf %34 : vector<2x96xf32>
    %36 = math.exp %35 : vector<2x96xf32>
    %cst_15 = arith.constant 1.000000e+00 : f32
    %37 = vector.broadcast %cst_15 : f32 to vector<2x96xf32>
    %38 = arith.addf %37, %36 : vector<2x96xf32>
    %39 = arith.divf %37, %38 : vector<2x96xf32>
    %40 = vector.extract_strided_slice %39 {offsets = [0, 0], sizes = [2, 32], strides = [1, 1]} : vector<2x96xf32> to vector<2x32xf32>
    %41 = vector.extract_strided_slice %39 {offsets = [0, 32], sizes = [2, 32], strides = [1, 1]} : vector<2x96xf32> to vector<2x32xf32>
    %42 = vector.extract_strided_slice %39 {offsets = [0, 64], sizes = [2, 32], strides = [1, 1]} : vector<2x96xf32> to vector<2x32xf32>
    %43 = vector.extract_strided_slice %33 {offsets = [0, 96], sizes = [2, 32], strides = [1, 1]} : vector<2x128xf32> to vector<2x32xf32>
    %44 = math.tanh %43 : vector<2x32xf32>
    %45 = arith.mulf %41, %11 : vector<2x32xf32>
    %46 = arith.mulf %40, %44 : vector<2x32xf32>
    %47 = arith.addf %45, %46 : vector<2x32xf32>
    %48 = math.tanh %47 : vector<2x32xf32>
    %49 = arith.mulf %42, %48 : vector<2x32xf32>
    %cst_16 = arith.constant dense<0.000000e+00> : vector<2x128xf32>
    %50 = tpu.matmul %30, %0, %cst_16 {dimension_numbers = #tpu.dot_dimension_numbers<[1], [0], [0], [1], [0, 0, 1, 1], [], []>} : vector<2x32xf32>, vector<32x128xf32>, vector<2x128xf32> -> vector<2x128xf32>
    %51 = vector.extract_strided_slice %7 {offsets = [2, 0], sizes = [2, 128], strides = [1, 1]} : vector<16x128xf32> to vector<2x128xf32>
    %52 = arith.addf %50, %51 : vector<2x128xf32>
    %53 = vector.extract_strided_slice %52 {offsets = [0, 0], sizes = [2, 96], strides = [1, 1]} : vector<2x128xf32> to vector<2x96xf32>
    %54 = arith.negf %53 : vector<2x96xf32>
    %55 = math.exp %54 : vector<2x96xf32>
    %cst_17 = arith.constant 1.000000e+00 : f32
    %56 = vector.broadcast %cst_17 : f32 to vector<2x96xf32>
    %57 = arith.addf %56, %55 : vector<2x96xf32>
    %58 = arith.divf %56, %57 : vector<2x96xf32>
    %59 = vector.extract_strided_slice %58 {offsets = [0, 0], sizes = [2, 32], strides = [1, 1]} : vector<2x96xf32> to vector<2x32xf32>
    %60 = vector.extract_strided_slice %58 {offsets = [0, 32], sizes = [2, 32], strides = [1, 1]} : vector<2x96xf32> to vector<2x32xf32>
    %61 = vector.extract_strided_slice %58 {offsets = [0, 64], sizes = [2, 32], strides = [1, 1]} : vector<2x96xf32> to vector<2x32xf32>
    %62 = vector.extract_strided_slice %52 {offsets = [0, 96], sizes = [2, 32], strides = [1, 1]} : vector<2x128xf32> to vector<2x32xf32>
    %63 = math.tanh %62 : vector<2x32xf32>
    %64 = arith.mulf %60, %28 : vector<2x32xf32>
    %65 = arith.mulf %59, %63 : vector<2x32xf32>
    %66 = arith.addf %64, %65 : vector<2x32xf32>
    %67 = math.tanh %66 : vector<2x32xf32>
    %68 = arith.mulf %61, %67 : vector<2x32xf32>
    %69 = tpu.concatenate %68, %49 in 1 : vector<2x32xf32>, vector<2x32xf32> -> vector<2x64xf32>
    %cst_18 = arith.constant dense<0.000000e+00> : vector<2x128xf32>
    %70 = tpu.matmul %69, %1, %cst_18 {dimension_numbers = #tpu.dot_dimension_numbers<[1], [0], [0], [1], [0, 0, 1, 1], [], []>} : vector<2x64xf32>, vector<64x128xf32>, vector<2x128xf32> -> vector<2x128xf32>
    %71 = arith.addf %70, %10 : vector<2x128xf32>
    %72 = vector.extract_strided_slice %71 {offsets = [0, 0], sizes = [2, 96], strides = [1, 1]} : vector<2x128xf32> to vector<2x96xf32>
    %73 = arith.negf %72 : vector<2x96xf32>
    %74 = math.exp %73 : vector<2x96xf32>
    %cst_19 = arith.constant 1.000000e+00 : f32
    %75 = vector.broadcast %cst_19 : f32 to vector<2x96xf32>
    %76 = arith.addf %75, %74 : vector<2x96xf32>
    %77 = arith.divf %75, %76 : vector<2x96xf32>
    %78 = vector.extract_strided_slice %77 {offsets = [0, 0], sizes = [2, 32], strides = [1, 1]} : vector<2x96xf32> to vector<2x32xf32>
    %79 = vector.extract_strided_slice %77 {offsets = [0, 32], sizes = [2, 32], strides = [1, 1]} : vector<2x96xf32> to vector<2x32xf32>
    %80 = vector.extract_strided_slice %77 {offsets = [0, 64], sizes = [2, 32], strides = [1, 1]} : vector<2x96xf32> to vector<2x32xf32>
    %81 = vector.extract_strided_slice %71 {offsets = [0, 96], sizes = [2, 32], strides = [1, 1]} : vector<2x128xf32> to vector<2x32xf32>
    %82 = math.tanh %81 : vector<2x32xf32>
    %83 = arith.mulf %79, %47 : vector<2x32xf32>
    %84 = arith.mulf %78, %82 : vector<2x32xf32>
    %85 = arith.addf %83, %84 : vector<2x32xf32>
    %86 = math.tanh %85 : vector<2x32xf32>
    %87 = arith.mulf %80, %86 : vector<2x32xf32>
    %cst_20 = arith.constant dense<0.000000e+00> : vector<2x128xf32>
    %88 = tpu.matmul %68, %0, %cst_20 {dimension_numbers = #tpu.dot_dimension_numbers<[1], [0], [0], [1], [0, 0, 1, 1], [], []>} : vector<2x32xf32>, vector<32x128xf32>, vector<2x128xf32> -> vector<2x128xf32>
    %89 = vector.extract_strided_slice %7 {offsets = [4, 0], sizes = [2, 128], strides = [1, 1]} : vector<16x128xf32> to vector<2x128xf32>
    %90 = arith.addf %88, %89 : vector<2x128xf32>
    %91 = vector.extract_strided_slice %90 {offsets = [0, 0], sizes = [2, 96], strides = [1, 1]} : vector<2x128xf32> to vector<2x96xf32>
    %92 = arith.negf %91 : vector<2x96xf32>
    %93 = math.exp %92 : vector<2x96xf32>
    %cst_21 = arith.constant 1.000000e+00 : f32
    %94 = vector.broadcast %cst_21 : f32 to vector<2x96xf32>
    %95 = arith.addf %94, %93 : vector<2x96xf32>
    %96 = arith.divf %94, %95 : vector<2x96xf32>
    %97 = vector.extract_strided_slice %96 {offsets = [0, 0], sizes = [2, 32], strides = [1, 1]} : vector<2x96xf32> to vector<2x32xf32>
    %98 = vector.extract_strided_slice %96 {offsets = [0, 32], sizes = [2, 32], strides = [1, 1]} : vector<2x96xf32> to vector<2x32xf32>
    %99 = vector.extract_strided_slice %96 {offsets = [0, 64], sizes = [2, 32], strides = [1, 1]} : vector<2x96xf32> to vector<2x32xf32>
    %100 = vector.extract_strided_slice %90 {offsets = [0, 96], sizes = [2, 32], strides = [1, 1]} : vector<2x128xf32> to vector<2x32xf32>
    %101 = math.tanh %100 : vector<2x32xf32>
    %102 = arith.mulf %98, %66 : vector<2x32xf32>
    %103 = arith.mulf %97, %101 : vector<2x32xf32>
    %104 = arith.addf %102, %103 : vector<2x32xf32>
    %105 = math.tanh %104 : vector<2x32xf32>
    %106 = arith.mulf %99, %105 : vector<2x32xf32>
    %107 = tpu.concatenate %106, %87 in 1 : vector<2x32xf32>, vector<2x32xf32> -> vector<2x64xf32>
    %cst_22 = arith.constant dense<0.000000e+00> : vector<2x128xf32>
    %108 = tpu.matmul %107, %1, %cst_22 {dimension_numbers = #tpu.dot_dimension_numbers<[1], [0], [0], [1], [0, 0, 1, 1], [], []>} : vector<2x64xf32>, vector<64x128xf32>, vector<2x128xf32> -> vector<2x128xf32>
    %109 = arith.addf %108, %10 : vector<2x128xf32>
    %110 = vector.extract_strided_slice %109 {offsets = [0, 0], sizes = [2, 96], strides = [1, 1]} : vector<2x128xf32> to vector<2x96xf32>
    %111 = arith.negf %110 : vector<2x96xf32>
    %112 = math.exp %111 : vector<2x96xf32>
    %cst_23 = arith.constant 1.000000e+00 : f32
    %113 = vector.broadcast %cst_23 : f32 to vector<2x96xf32>
    %114 = arith.addf %113, %112 : vector<2x96xf32>
    %115 = arith.divf %113, %114 : vector<2x96xf32>
    %116 = vector.extract_strided_slice %115 {offsets = [0, 0], sizes = [2, 32], strides = [1, 1]} : vector<2x96xf32> to vector<2x32xf32>
    %117 = vector.extract_strided_slice %115 {offsets = [0, 32], sizes = [2, 32], strides = [1, 1]} : vector<2x96xf32> to vector<2x32xf32>
    %118 = vector.extract_strided_slice %115 {offsets = [0, 64], sizes = [2, 32], strides = [1, 1]} : vector<2x96xf32> to vector<2x32xf32>
    %119 = vector.extract_strided_slice %109 {offsets = [0, 96], sizes = [2, 32], strides = [1, 1]} : vector<2x128xf32> to vector<2x32xf32>
    %120 = math.tanh %119 : vector<2x32xf32>
    %121 = arith.mulf %117, %85 : vector<2x32xf32>
    %122 = arith.mulf %116, %120 : vector<2x32xf32>
    %123 = arith.addf %121, %122 : vector<2x32xf32>
    %124 = math.tanh %123 : vector<2x32xf32>
    %125 = arith.mulf %118, %124 : vector<2x32xf32>
    %cst_24 = arith.constant dense<0.000000e+00> : vector<2x128xf32>
    %126 = tpu.matmul %106, %0, %cst_24 {dimension_numbers = #tpu.dot_dimension_numbers<[1], [0], [0], [1], [0, 0, 1, 1], [], []>} : vector<2x32xf32>, vector<32x128xf32>, vector<2x128xf32> -> vector<2x128xf32>
    %127 = vector.extract_strided_slice %7 {offsets = [6, 0], sizes = [2, 128], strides = [1, 1]} : vector<16x128xf32> to vector<2x128xf32>
    %128 = arith.addf %126, %127 : vector<2x128xf32>
    %129 = vector.extract_strided_slice %128 {offsets = [0, 0], sizes = [2, 96], strides = [1, 1]} : vector<2x128xf32> to vector<2x96xf32>
    %130 = arith.negf %129 : vector<2x96xf32>
    %131 = math.exp %130 : vector<2x96xf32>
    %cst_25 = arith.constant 1.000000e+00 : f32
    %132 = vector.broadcast %cst_25 : f32 to vector<2x96xf32>
    %133 = arith.addf %132, %131 : vector<2x96xf32>
    %134 = arith.divf %132, %133 : vector<2x96xf32>
    %135 = vector.extract_strided_slice %134 {offsets = [0, 0], sizes = [2, 32], strides = [1, 1]} : vector<2x96xf32> to vector<2x32xf32>
    %136 = vector.extract_strided_slice %134 {offsets = [0, 32], sizes = [2, 32], strides = [1, 1]} : vector<2x96xf32> to vector<2x32xf32>
    %137 = vector.extract_strided_slice %134 {offsets = [0, 64], sizes = [2, 32], strides = [1, 1]} : vector<2x96xf32> to vector<2x32xf32>
    %138 = vector.extract_strided_slice %128 {offsets = [0, 96], sizes = [2, 32], strides = [1, 1]} : vector<2x128xf32> to vector<2x32xf32>
    %139 = math.tanh %138 : vector<2x32xf32>
    %140 = arith.mulf %136, %104 : vector<2x32xf32>
    %141 = arith.mulf %135, %139 : vector<2x32xf32>
    %142 = arith.addf %140, %141 : vector<2x32xf32>
    %143 = math.tanh %142 : vector<2x32xf32>
    %144 = arith.mulf %137, %143 : vector<2x32xf32>
    %145 = tpu.concatenate %144, %125 in 1 : vector<2x32xf32>, vector<2x32xf32> -> vector<2x64xf32>
    %cst_26 = arith.constant dense<0.000000e+00> : vector<2x128xf32>
    %146 = tpu.matmul %145, %1, %cst_26 {dimension_numbers = #tpu.dot_dimension_numbers<[1], [0], [0], [1], [0, 0, 1, 1], [], []>} : vector<2x64xf32>, vector<64x128xf32>, vector<2x128xf32> -> vector<2x128xf32>
    %147 = arith.addf %146, %10 : vector<2x128xf32>
    %148 = vector.extract_strided_slice %147 {offsets = [0, 0], sizes = [2, 96], strides = [1, 1]} : vector<2x128xf32> to vector<2x96xf32>
    %149 = arith.negf %148 : vector<2x96xf32>
    %150 = math.exp %149 : vector<2x96xf32>
    %cst_27 = arith.constant 1.000000e+00 : f32
    %151 = vector.broadcast %cst_27 : f32 to vector<2x96xf32>
    %152 = arith.addf %151, %150 : vector<2x96xf32>
    %153 = arith.divf %151, %152 : vector<2x96xf32>
    %154 = vector.extract_strided_slice %153 {offsets = [0, 0], sizes = [2, 32], strides = [1, 1]} : vector<2x96xf32> to vector<2x32xf32>
    %155 = vector.extract_strided_slice %153 {offsets = [0, 32], sizes = [2, 32], strides = [1, 1]} : vector<2x96xf32> to vector<2x32xf32>
    %156 = vector.extract_strided_slice %153 {offsets = [0, 64], sizes = [2, 32], strides = [1, 1]} : vector<2x96xf32> to vector<2x32xf32>
    %157 = vector.extract_strided_slice %147 {offsets = [0, 96], sizes = [2, 32], strides = [1, 1]} : vector<2x128xf32> to vector<2x32xf32>
    %158 = math.tanh %157 : vector<2x32xf32>
    %159 = arith.mulf %155, %123 : vector<2x32xf32>
    %160 = arith.mulf %154, %158 : vector<2x32xf32>
    %161 = arith.addf %159, %160 : vector<2x32xf32>
    %162 = math.tanh %161 : vector<2x32xf32>
    %163 = arith.mulf %156, %162 : vector<2x32xf32>
    %cst_28 = arith.constant dense<0.000000e+00> : vector<2x128xf32>
    %164 = tpu.matmul %144, %0, %cst_28 {dimension_numbers = #tpu.dot_dimension_numbers<[1], [0], [0], [1], [0, 0, 1, 1], [], []>} : vector<2x32xf32>, vector<32x128xf32>, vector<2x128xf32> -> vector<2x128xf32>
    %165 = vector.extract_strided_slice %7 {offsets = [8, 0], sizes = [2, 128], strides = [1, 1]} : vector<16x128xf32> to vector<2x128xf32>
    %166 = arith.addf %164, %165 : vector<2x128xf32>
    %167 = vector.extract_strided_slice %166 {offsets = [0, 0], sizes = [2, 96], strides = [1, 1]} : vector<2x128xf32> to vector<2x96xf32>
    %168 = arith.negf %167 : vector<2x96xf32>
    %169 = math.exp %168 : vector<2x96xf32>
    %cst_29 = arith.constant 1.000000e+00 : f32
    %170 = vector.broadcast %cst_29 : f32 to vector<2x96xf32>
    %171 = arith.addf %170, %169 : vector<2x96xf32>
    %172 = arith.divf %170, %171 : vector<2x96xf32>
    %173 = vector.extract_strided_slice %172 {offsets = [0, 0], sizes = [2, 32], strides = [1, 1]} : vector<2x96xf32> to vector<2x32xf32>
    %174 = vector.extract_strided_slice %172 {offsets = [0, 32], sizes = [2, 32], strides = [1, 1]} : vector<2x96xf32> to vector<2x32xf32>
    %175 = vector.extract_strided_slice %172 {offsets = [0, 64], sizes = [2, 32], strides = [1, 1]} : vector<2x96xf32> to vector<2x32xf32>
    %176 = vector.extract_strided_slice %166 {offsets = [0, 96], sizes = [2, 32], strides = [1, 1]} : vector<2x128xf32> to vector<2x32xf32>
    %177 = math.tanh %176 : vector<2x32xf32>
    %178 = arith.mulf %174, %142 : vector<2x32xf32>
    %179 = arith.mulf %173, %177 : vector<2x32xf32>
    %180 = arith.addf %178, %179 : vector<2x32xf32>
    %181 = math.tanh %180 : vector<2x32xf32>
    %182 = arith.mulf %175, %181 : vector<2x32xf32>
    %183 = tpu.concatenate %182, %163 in 1 : vector<2x32xf32>, vector<2x32xf32> -> vector<2x64xf32>
    %cst_30 = arith.constant dense<0.000000e+00> : vector<2x128xf32>
    %184 = tpu.matmul %183, %1, %cst_30 {dimension_numbers = #tpu.dot_dimension_numbers<[1], [0], [0], [1], [0, 0, 1, 1], [], []>} : vector<2x64xf32>, vector<64x128xf32>, vector<2x128xf32> -> vector<2x128xf32>
    %185 = arith.addf %184, %10 : vector<2x128xf32>
    %186 = vector.extract_strided_slice %185 {offsets = [0, 0], sizes = [2, 96], strides = [1, 1]} : vector<2x128xf32> to vector<2x96xf32>
    %187 = arith.negf %186 : vector<2x96xf32>
    %188 = math.exp %187 : vector<2x96xf32>
    %cst_31 = arith.constant 1.000000e+00 : f32
    %189 = vector.broadcast %cst_31 : f32 to vector<2x96xf32>
    %190 = arith.addf %189, %188 : vector<2x96xf32>
    %191 = arith.divf %189, %190 : vector<2x96xf32>
    %192 = vector.extract_strided_slice %191 {offsets = [0, 0], sizes = [2, 32], strides = [1, 1]} : vector<2x96xf32> to vector<2x32xf32>
    %193 = vector.extract_strided_slice %191 {offsets = [0, 32], sizes = [2, 32], strides = [1, 1]} : vector<2x96xf32> to vector<2x32xf32>
    %194 = vector.extract_strided_slice %191 {offsets = [0, 64], sizes = [2, 32], strides = [1, 1]} : vector<2x96xf32> to vector<2x32xf32>
    %195 = vector.extract_strided_slice %185 {offsets = [0, 96], sizes = [2, 32], strides = [1, 1]} : vector<2x128xf32> to vector<2x32xf32>
    %196 = math.tanh %195 : vector<2x32xf32>
    %197 = arith.mulf %193, %161 : vector<2x32xf32>
    %198 = arith.mulf %192, %196 : vector<2x32xf32>
    %199 = arith.addf %197, %198 : vector<2x32xf32>
    %200 = math.tanh %199 : vector<2x32xf32>
    %201 = arith.mulf %194, %200 : vector<2x32xf32>
    %cst_32 = arith.constant dense<0.000000e+00> : vector<2x128xf32>
    %202 = tpu.matmul %182, %0, %cst_32 {dimension_numbers = #tpu.dot_dimension_numbers<[1], [0], [0], [1], [0, 0, 1, 1], [], []>} : vector<2x32xf32>, vector<32x128xf32>, vector<2x128xf32> -> vector<2x128xf32>
    %203 = vector.extract_strided_slice %7 {offsets = [10, 0], sizes = [2, 128], strides = [1, 1]} : vector<16x128xf32> to vector<2x128xf32>
    %204 = arith.addf %202, %203 : vector<2x128xf32>
    %205 = vector.extract_strided_slice %204 {offsets = [0, 0], sizes = [2, 96], strides = [1, 1]} : vector<2x128xf32> to vector<2x96xf32>
    %206 = arith.negf %205 : vector<2x96xf32>
    %207 = math.exp %206 : vector<2x96xf32>
    %cst_33 = arith.constant 1.000000e+00 : f32
    %208 = vector.broadcast %cst_33 : f32 to vector<2x96xf32>
    %209 = arith.addf %208, %207 : vector<2x96xf32>
    %210 = arith.divf %208, %209 : vector<2x96xf32>
    %211 = vector.extract_strided_slice %210 {offsets = [0, 0], sizes = [2, 32], strides = [1, 1]} : vector<2x96xf32> to vector<2x32xf32>
    %212 = vector.extract_strided_slice %210 {offsets = [0, 32], sizes = [2, 32], strides = [1, 1]} : vector<2x96xf32> to vector<2x32xf32>
    %213 = vector.extract_strided_slice %210 {offsets = [0, 64], sizes = [2, 32], strides = [1, 1]} : vector<2x96xf32> to vector<2x32xf32>
    %214 = vector.extract_strided_slice %204 {offsets = [0, 96], sizes = [2, 32], strides = [1, 1]} : vector<2x128xf32> to vector<2x32xf32>
    %215 = math.tanh %214 : vector<2x32xf32>
    %216 = arith.mulf %212, %180 : vector<2x32xf32>
    %217 = arith.mulf %211, %215 : vector<2x32xf32>
    %218 = arith.addf %216, %217 : vector<2x32xf32>
    %219 = math.tanh %218 : vector<2x32xf32>
    %220 = arith.mulf %213, %219 : vector<2x32xf32>
    %221 = tpu.concatenate %220, %201 in 1 : vector<2x32xf32>, vector<2x32xf32> -> vector<2x64xf32>
    %cst_34 = arith.constant dense<0.000000e+00> : vector<2x128xf32>
    %222 = tpu.matmul %221, %1, %cst_34 {dimension_numbers = #tpu.dot_dimension_numbers<[1], [0], [0], [1], [0, 0, 1, 1], [], []>} : vector<2x64xf32>, vector<64x128xf32>, vector<2x128xf32> -> vector<2x128xf32>
    %223 = arith.addf %222, %10 : vector<2x128xf32>
    %224 = vector.extract_strided_slice %223 {offsets = [0, 0], sizes = [2, 96], strides = [1, 1]} : vector<2x128xf32> to vector<2x96xf32>
    %225 = arith.negf %224 : vector<2x96xf32>
    %226 = math.exp %225 : vector<2x96xf32>
    %cst_35 = arith.constant 1.000000e+00 : f32
    %227 = vector.broadcast %cst_35 : f32 to vector<2x96xf32>
    %228 = arith.addf %227, %226 : vector<2x96xf32>
    %229 = arith.divf %227, %228 : vector<2x96xf32>
    %230 = vector.extract_strided_slice %229 {offsets = [0, 0], sizes = [2, 32], strides = [1, 1]} : vector<2x96xf32> to vector<2x32xf32>
    %231 = vector.extract_strided_slice %229 {offsets = [0, 32], sizes = [2, 32], strides = [1, 1]} : vector<2x96xf32> to vector<2x32xf32>
    %232 = vector.extract_strided_slice %229 {offsets = [0, 64], sizes = [2, 32], strides = [1, 1]} : vector<2x96xf32> to vector<2x32xf32>
    %233 = vector.extract_strided_slice %223 {offsets = [0, 96], sizes = [2, 32], strides = [1, 1]} : vector<2x128xf32> to vector<2x32xf32>
    %234 = math.tanh %233 : vector<2x32xf32>
    %235 = arith.mulf %231, %199 : vector<2x32xf32>
    %236 = arith.mulf %230, %234 : vector<2x32xf32>
    %237 = arith.addf %235, %236 : vector<2x32xf32>
    %238 = math.tanh %237 : vector<2x32xf32>
    %239 = arith.mulf %232, %238 : vector<2x32xf32>
    %cst_36 = arith.constant dense<0.000000e+00> : vector<2x128xf32>
    %240 = tpu.matmul %220, %0, %cst_36 {dimension_numbers = #tpu.dot_dimension_numbers<[1], [0], [0], [1], [0, 0, 1, 1], [], []>} : vector<2x32xf32>, vector<32x128xf32>, vector<2x128xf32> -> vector<2x128xf32>
    %241 = vector.extract_strided_slice %7 {offsets = [12, 0], sizes = [2, 128], strides = [1, 1]} : vector<16x128xf32> to vector<2x128xf32>
    %242 = arith.addf %240, %241 : vector<2x128xf32>
    %243 = vector.extract_strided_slice %242 {offsets = [0, 0], sizes = [2, 96], strides = [1, 1]} : vector<2x128xf32> to vector<2x96xf32>
    %244 = arith.negf %243 : vector<2x96xf32>
    %245 = math.exp %244 : vector<2x96xf32>
    %cst_37 = arith.constant 1.000000e+00 : f32
    %246 = vector.broadcast %cst_37 : f32 to vector<2x96xf32>
    %247 = arith.addf %246, %245 : vector<2x96xf32>
    %248 = arith.divf %246, %247 : vector<2x96xf32>
    %249 = vector.extract_strided_slice %248 {offsets = [0, 0], sizes = [2, 32], strides = [1, 1]} : vector<2x96xf32> to vector<2x32xf32>
    %250 = vector.extract_strided_slice %248 {offsets = [0, 32], sizes = [2, 32], strides = [1, 1]} : vector<2x96xf32> to vector<2x32xf32>
    %251 = vector.extract_strided_slice %248 {offsets = [0, 64], sizes = [2, 32], strides = [1, 1]} : vector<2x96xf32> to vector<2x32xf32>
    %252 = vector.extract_strided_slice %242 {offsets = [0, 96], sizes = [2, 32], strides = [1, 1]} : vector<2x128xf32> to vector<2x32xf32>
    %253 = math.tanh %252 : vector<2x32xf32>
    %254 = arith.mulf %250, %218 : vector<2x32xf32>
    %255 = arith.mulf %249, %253 : vector<2x32xf32>
    %256 = arith.addf %254, %255 : vector<2x32xf32>
    %257 = math.tanh %256 : vector<2x32xf32>
    %258 = arith.mulf %251, %257 : vector<2x32xf32>
    %259 = tpu.concatenate %258, %239 in 1 : vector<2x32xf32>, vector<2x32xf32> -> vector<2x64xf32>
    %cst_38 = arith.constant dense<0.000000e+00> : vector<2x128xf32>
    %260 = tpu.matmul %259, %1, %cst_38 {dimension_numbers = #tpu.dot_dimension_numbers<[1], [0], [0], [1], [0, 0, 1, 1], [], []>} : vector<2x64xf32>, vector<64x128xf32>, vector<2x128xf32> -> vector<2x128xf32>
    %261 = arith.addf %260, %10 : vector<2x128xf32>
    %262 = vector.extract_strided_slice %261 {offsets = [0, 0], sizes = [2, 96], strides = [1, 1]} : vector<2x128xf32> to vector<2x96xf32>
    %263 = arith.negf %262 : vector<2x96xf32>
    %264 = math.exp %263 : vector<2x96xf32>
    %cst_39 = arith.constant 1.000000e+00 : f32
    %265 = vector.broadcast %cst_39 : f32 to vector<2x96xf32>
    %266 = arith.addf %265, %264 : vector<2x96xf32>
    %267 = arith.divf %265, %266 : vector<2x96xf32>
    %268 = vector.extract_strided_slice %267 {offsets = [0, 0], sizes = [2, 32], strides = [1, 1]} : vector<2x96xf32> to vector<2x32xf32>
    %269 = vector.extract_strided_slice %267 {offsets = [0, 32], sizes = [2, 32], strides = [1, 1]} : vector<2x96xf32> to vector<2x32xf32>
    %270 = vector.extract_strided_slice %267 {offsets = [0, 64], sizes = [2, 32], strides = [1, 1]} : vector<2x96xf32> to vector<2x32xf32>
    %271 = vector.extract_strided_slice %261 {offsets = [0, 96], sizes = [2, 32], strides = [1, 1]} : vector<2x128xf32> to vector<2x32xf32>
    %272 = math.tanh %271 : vector<2x32xf32>
    %273 = arith.mulf %269, %237 : vector<2x32xf32>
    %274 = arith.mulf %268, %272 : vector<2x32xf32>
    %275 = arith.addf %273, %274 : vector<2x32xf32>
    %276 = math.tanh %275 : vector<2x32xf32>
    %277 = arith.mulf %270, %276 : vector<2x32xf32>
    %cst_40 = arith.constant dense<0.000000e+00> : vector<2x128xf32>
    %278 = tpu.matmul %258, %0, %cst_40 {dimension_numbers = #tpu.dot_dimension_numbers<[1], [0], [0], [1], [0, 0, 1, 1], [], []>} : vector<2x32xf32>, vector<32x128xf32>, vector<2x128xf32> -> vector<2x128xf32>
    %279 = vector.extract_strided_slice %7 {offsets = [14, 0], sizes = [2, 128], strides = [1, 1]} : vector<16x128xf32> to vector<2x128xf32>
    %280 = arith.addf %278, %279 : vector<2x128xf32>
    %281 = vector.extract_strided_slice %280 {offsets = [0, 0], sizes = [2, 96], strides = [1, 1]} : vector<2x128xf32> to vector<2x96xf32>
    %282 = arith.negf %281 : vector<2x96xf32>
    %283 = math.exp %282 : vector<2x96xf32>
    %cst_41 = arith.constant 1.000000e+00 : f32
    %284 = vector.broadcast %cst_41 : f32 to vector<2x96xf32>
    %285 = arith.addf %284, %283 : vector<2x96xf32>
    %286 = arith.divf %284, %285 : vector<2x96xf32>
    %287 = vector.extract_strided_slice %286 {offsets = [0, 0], sizes = [2, 32], strides = [1, 1]} : vector<2x96xf32> to vector<2x32xf32>
    %288 = vector.extract_strided_slice %286 {offsets = [0, 32], sizes = [2, 32], strides = [1, 1]} : vector<2x96xf32> to vector<2x32xf32>
    %289 = vector.extract_strided_slice %286 {offsets = [0, 64], sizes = [2, 32], strides = [1, 1]} : vector<2x96xf32> to vector<2x32xf32>
    %290 = vector.extract_strided_slice %280 {offsets = [0, 96], sizes = [2, 32], strides = [1, 1]} : vector<2x128xf32> to vector<2x32xf32>
    %291 = math.tanh %290 : vector<2x32xf32>
    %292 = arith.mulf %288, %256 : vector<2x32xf32>
    %293 = arith.mulf %287, %291 : vector<2x32xf32>
    %294 = arith.addf %292, %293 : vector<2x32xf32>
    %295 = math.tanh %294 : vector<2x32xf32>
    %296 = arith.mulf %289, %295 : vector<2x32xf32>
    %297 = tpu.concatenate %296, %277 in 1 : vector<2x32xf32>, vector<2x32xf32> -> vector<2x64xf32>
    %cst_42 = arith.constant dense<0.000000e+00> : vector<2x128xf32>
    %298 = tpu.matmul %297, %1, %cst_42 {dimension_numbers = #tpu.dot_dimension_numbers<[1], [0], [0], [1], [0, 0, 1, 1], [], []>} : vector<2x64xf32>, vector<64x128xf32>, vector<2x128xf32> -> vector<2x128xf32>
    %299 = arith.addf %298, %10 : vector<2x128xf32>
    %300 = vector.extract_strided_slice %299 {offsets = [0, 0], sizes = [2, 96], strides = [1, 1]} : vector<2x128xf32> to vector<2x96xf32>
    %301 = arith.negf %300 : vector<2x96xf32>
    %302 = math.exp %301 : vector<2x96xf32>
    %cst_43 = arith.constant 1.000000e+00 : f32
    %303 = vector.broadcast %cst_43 : f32 to vector<2x96xf32>
    %304 = arith.addf %303, %302 : vector<2x96xf32>
    %305 = arith.divf %303, %304 : vector<2x96xf32>
    %306 = vector.extract_strided_slice %305 {offsets = [0, 0], sizes = [2, 32], strides = [1, 1]} : vector<2x96xf32> to vector<2x32xf32>
    %307 = vector.extract_strided_slice %305 {offsets = [0, 32], sizes = [2, 32], strides = [1, 1]} : vector<2x96xf32> to vector<2x32xf32>
    %308 = vector.extract_strided_slice %305 {offsets = [0, 64], sizes = [2, 32], strides = [1, 1]} : vector<2x96xf32> to vector<2x32xf32>
    %309 = vector.extract_strided_slice %299 {offsets = [0, 96], sizes = [2, 32], strides = [1, 1]} : vector<2x128xf32> to vector<2x32xf32>
    %310 = math.tanh %309 : vector<2x32xf32>
    %311 = arith.mulf %307, %275 : vector<2x32xf32>
    %312 = arith.mulf %306, %310 : vector<2x32xf32>
    %313 = arith.addf %311, %312 : vector<2x32xf32>
    %314 = math.tanh %313 : vector<2x32xf32>
    %315 = arith.mulf %308, %314 : vector<2x32xf32>
    %c0_44 = arith.constant 0 : index
    %c0_45 = arith.constant 0 : index
    %316 = vector.load %arg6[%c0_44, %c0_45] : memref<32x1xf32, #tpu.memory_space<vmem>>, vector<32x1xf32>
    %cst_46 = arith.constant dense<0.000000e+00> : vector<2x1xf32>
    %317 = tpu.matmul %315, %316, %cst_46 {dimension_numbers = #tpu.dot_dimension_numbers<[1], [0], [0], [1], [0, 0, 1, 1], [], []>} : vector<2x32xf32>, vector<32x1xf32>, vector<2x1xf32> -> vector<2x1xf32>
    %c0_47 = arith.constant 0 : index
    %c0_48 = arith.constant 0 : index
    %318 = vector.load %arg7[%c0_47, %c0_48] : memref<1x1xf32, #tpu.memory_space<vmem>>, vector<1x1xf32>
    %319 = vector.broadcast %318 : vector<1x1xf32> to vector<2x1xf32>
    %320 = arith.addf %317, %319 : vector<2x1xf32>
    %c0_49 = arith.constant 0 : index
    %c0_50 = arith.constant 0 : index
    %321 = vector.load %arg8[%c0_49, %c0_50] : memref<2x1xf32, #tpu.memory_space<vmem>>, vector<2x1xf32>
    tpu.vector_store %arg8[%c0_49, %c0_50], %320 {strides = array<i32>} : memref<2x1xf32, #tpu.memory_space<vmem>>, vector<2x1xf32>,
    return
  }
}

</mosaic_0001>

<llo_original>
// kernel: tpu_custom_call.1
$region0: #{tpu_custom_call.1}
  #allocation0 [shape = 'u32[]', space=smem, size = 0x4, offset = 0x4, fixed_abs, tag = 'smem constant byte address 0x4 - core index']
  #allocation1 [shape = 'u32[144,128]{1,0:T(1,128)}', space=vmem, size = 0x12000, scoped, tag = 'internal scratch']
  #allocation2 [shape = 'f32[1,1]{1,0:T(1,128)S(1)}', space=vmem, size = 0x200, scoped, tag = 'scoped memory for tpu_custom_call.1']
  %s0 = inlined_call_operand.vmem [shape: f32[16,1], index: 0, kind: input, shape index: {}]
  %s1 = inlined_call_operand.vmem [shape: f32[1,128], index: 1, kind: input, shape index: {}]
  %s2 = inlined_call_operand.hbm [shape: f32[32,128], index: 2, kind: input, shape index: {}]
  %s3 = inlined_call_operand.vmem [shape: f32[1,128], index: 3, kind: input, shape index: {}]
  %s4 = inlined_call_operand.vmem [shape: f32[64,128], index: 4, kind: input, shape index: {}]
  %s5 = inlined_call_operand.vmem [shape: f32[1,128], index: 5, kind: input, shape index: {}]
  %s6 = inlined_call_operand.vmem [shape: f32[32,1], index: 6, kind: input, shape index: {}]
  %s7 = inlined_call_operand.<no memory space> [shape: f32[1,1], index: 7, kind: input, shape index: {}]
  %s8 = inlined_call_operand.vmem [shape: f32[2,1], index: 8, kind: output, shape index: {}]
  %s9 = sld [smem:[#allocation0]]
  $region46: #{tpu_custom_call.1} parent=0
    _
  %s11 = ssub.s32 1, %s9
  %s12 = scalar_select 0, %s11, %s9
  %v13 = vstv %s7
  %14 = vst [vmem:[#allocation2] sm:$0x1] %v13
  $region1: #{tpu_custom_call.1} parent=0
    #allocation3 [shape = 'u8[16384]{0}', space=vmem, size = 0x4000, scoped, tag = 'input window, operand 2, single buffered']
    #allocation4 [shape = 's32[1]{0}', space=sflag, size = 0x4, scoped, tag = 'scoped memory for tpu_custom_call.1']
    %15 = vsyncpa [#allocation4], 0
    // Predicated region
    $region2: #{tpu_custom_call.1} parent=1 // pred_check
      _
    $region3: #{tpu_custom_call.1} parent=1 // pred_check_branch
      %17 = sbr.rel (0) target = $region5
    $region4: #{tpu_custom_call.1} parent=1 // pred_region
      _
    $region5: #{tpu_custom_call.1} parent=1 // pred_fallthru
      _
    // Predicated region
    $region6: #{tpu_custom_call.1} parent=1 // pred_check
      _
    $region7: #{tpu_custom_call.1} parent=1 // pred_check_branch
      %19 = sbr.rel (0) target = $region9
    $region8: #{tpu_custom_call.1} parent=1 // pred_region
      _
    $region9: #{tpu_custom_call.1} parent=1 // pred_fallthru
      _
    // Predicated region
    $region10: #{tpu_custom_call.1} parent=1 // pred_check
      _
    $region11: #{tpu_custom_call.1} parent=1 // pred_check_branch
      %21 = sbr.rel (0) target = $region13
    $region12: #{tpu_custom_call.1} parent=1 // pred_region
      %s23 = ssub.s32 512, 512
      %24 = vsyncadd [#allocation4], %s23
      %s25 = sshll.u32 [#allocation3], 4
      %s26 = int_to_ptr.vmem [resolvable:$true] %s25
      %31 = dma.hbm_to_vmem [thread:$0]  %s2, 512, %s26, [#allocation4], 128, 128, 8
    $region13: #{tpu_custom_call.1} parent=1 // pred_fallthru
      _
    // Predicated region
    $region14: #{tpu_custom_call.1} parent=1 // pred_check
      _
    $region15: #{tpu_custom_call.1} parent=1 // pred_check_branch
      %33 = sbr.rel (0) target = $region17
    $region16: #{tpu_custom_call.1} parent=1 // pred_region
      _
    $region17: #{tpu_custom_call.1} parent=1 // pred_fallthru
      _
    // Predicated region
    $region18: #{tpu_custom_call.1} parent=1 // pred_check
      _
    $region19: #{tpu_custom_call.1} parent=1 // pred_check_branch
      %35 = sbr.rel (0) target = $region21
    $region20: #{tpu_custom_call.1} parent=1 // pred_region
      _
    $region21: #{tpu_custom_call.1} parent=1 // pred_fallthru
      _
    // Predicated region
    $region22: #{tpu_custom_call.1} parent=1 // pred_check
      _
    $region23: #{tpu_custom_call.1} parent=1 // pred_check_branch
      %37 = sbr.rel (0) target = $region25
    $region24: #{tpu_custom_call.1} parent=1 // pred_region
      _
    $region25: #{tpu_custom_call.1} parent=1 // pred_fallthru
      _
    // Predicated region
    $region26: #{tpu_custom_call.1} parent=1 // pred_check
      _
    $region27: #{tpu_custom_call.1} parent=1 // pred_check_branch
      %39 = sbr.rel (0) target = $region29
    $region28: #{tpu_custom_call.1} parent=1 // pred_region
      _
    $region29: #{tpu_custom_call.1} parent=1 // pred_fallthru
      _
    // Predicated region
    $region30: #{tpu_custom_call.1} parent=1 // pred_check
      _
    $region31: #{tpu_custom_call.1} parent=1 // pred_check_branch
      %41 = sbr.rel (0) target = $region33
    $region32: #{tpu_custom_call.1} parent=1 // pred_region
      _
    $region33: #{tpu_custom_call.1} parent=1 // pred_fallthru
      _
    // Predicated region
    $region34: #{tpu_custom_call.1} parent=1 // pred_check
      _
    $region35: #{tpu_custom_call.1} parent=1 // pred_check_branch
      %43 = sbr.rel (0) target = $region37
    $region36: #{tpu_custom_call.1} parent=1 // pred_region
      %44 = dma.done [#allocation4], 512
    $region37: #{tpu_custom_call.1} parent=1 // pred_fallthru
      _
    %v45 = vld [vmem:[#allocation3] sm:$0xff]
    %v46 = vld [vmem:[#allocation3 + $0x8] sm:$0xff]
    %v47 = vld [vmem:[#allocation3 + $0x10] sm:$0xff]
    %v48 = vld [vmem:[#allocation3 + $0x18] sm:$0xff]
    %v49 = vld [vmem:[%s4] sm:$0xff]
    %v50 = vld [vmem:[%s4 + $0x8] sm:$0xff]
    %v51 = vld [vmem:[%s4 + $0x10] sm:$0xff]
    %v52 = vld [vmem:[%s4 + $0x18] sm:$0xff]
    %v53 = vld [vmem:[%s4 + $0x20] sm:$0xff]
    %v54 = vld [vmem:[%s4 + $0x28] sm:$0xff]
    %v55 = vld [vmem:[%s4 + $0x30] sm:$0xff]
    %v56 = vld [vmem:[%s4 + $0x38] sm:$0xff]
    %v57 = vld [vmem:[%s0] sm:$0xff]
    %v58 = vld [vmem:[%s0 + $0x8] sm:$0xff]
    %v59 = vld [vmem:[%s1] sm:$0x1]
    %v60 = vld [vmem:[%s3] sm:$0x1]
    %v62 = vlaneseq
    %v63 = vshrl.u32 %v62, 7
    %v64 = vsub.s32 0, %v63
    %v65 = vrot.slane %v60, %v64
    %vm67 = vcmask 7168
    %v69 = vsel %vm67, %v57, 0
    %v72 = vsel %vm67, %v58, 0
    %vm74 = vcmask 1040384
    %v76 = vsel %vm74, %v59, 0
    %78 = vmatprep.subr.mxu0 0.0
    %79 = vmatpush1.msra.mxu0 %v76
    %80 = vmatprep.subr.mxu0 0.0
    %81 = vmatpush1.msra.mxu0 0.0
    %82 = vmatprep.subr.mxu0 0.0
    %83 = vmatpush1.msra.mxu0 0.0
    %84 = vmatprep.subr.mxu0 0.0
    %85 = vmatpush1.msra.mxu0 0.0
    %86 = vmatprep.subr.mxu0 0.0
    %87 = vmatpush1.msra.mxu0 0.0
    %88 = vmatprep.subr.mxu0 0.0
    %89 = vmatpush1.msra.mxu0 0.0
    %90 = vmatprep.subr.mxu0 0.0
    %91 = vmatpush1.msra.mxu0 0.0
    %92 = vmatprep.subr.mxu0 0.0
    %93 = vmatpush1.msra.mxu0 0.0
    %94 = vmatprep.subr.mxu0 0.0
    %95 = vmatpush1.msra.mxu0 0.0
    %96 = vmatprep.subr.mxu0 0.0
    %97 = vmatpush1.msra.mxu0 0.0
    %98 = vmatprep.subr.mxu0 0.0
    %99 = vmatpush1.msra.mxu0 0.0
    %100 = vmatprep.subr.mxu0 0.0
    %101 = vmatpush1.msra.mxu0 0.0
    %102 = vmatprep.subr.mxu0 0.0
    %103 = vmatpush1.msra.mxu0 0.0
    %104 = vmatprep.subr.mxu0 0.0
    %105 = vmatpush1.msra.mxu0 0.0
    %106 = vmatprep.subr.mxu0 0.0
    %107 = vmatpush1.msra.mxu0 0.0
    %108 = vmatprep.subr.mxu0 0.0
    %109 = vmatpush1.msra.mxu0 0.0
    %110 = vmatprep.subr.mxu0 0.0
    %111 = vmatpush1.msra.mxu0 0.0
    %112 = vmatprep.subr.mxu0 0.0
    %113 = vmatpush1.msra.mxu0 0.0
    %114 = vmatprep.subr.mxu0 0.0
    %115 = vmatpush1.msra.mxu0 0.0
    %116 = vmatprep.subr.mxu0 0.0
    %117 = vmatpush1.msra.mxu0 0.0
    %118 = vmatprep.subr.mxu0 0.0
    %119 = vmatpush1.msra.mxu0 0.0
    %120 = vmatprep.subr.mxu0 0.0
    %121 = vmatpush1.msra.mxu0 0.0
    %122 = vmatprep.subr.mxu0 0.0
    %123 = vmatpush1.msra.mxu0 0.0
    %124 = vmatprep.subr.mxu0 0.0
    %125 = vmatpush1.msra.mxu0 0.0
    %126 = vmatprep.subr.mxu0 0.0
    %127 = vmatpush1.msra.mxu0 0.0
    %128 = vmatprep.subr.mxu0 0.0
    %129 = vmatpush1.msra.mxu0 0.0
    %130 = vmatprep.subr.mxu0 0.0
    %131 = vmatpush1.msra.mxu0 0.0
    %132 = vmatprep.subr.mxu0 0.0
    %133 = vmatpush1.msra.mxu0 0.0
    %134 = vmatprep.subr.mxu0 0.0
    %135 = vmatpush1.msra.mxu0 0.0
    %136 = vmatprep.subr.mxu0 0.0
    %137 = vmatpush1.msra.mxu0 0.0
    %138 = vmatprep.subr.mxu0 0.0
    %139 = vmatpush1.msra.mxu0 0.0
    %140 = vmatprep.subr.mxu0 0.0
    %141 = vmatpush1.msra.mxu0 0.0
    %142 = vmatprep.mubr.f32.mxu0 0.0
    %143 = vmatmul.mubr.f32.gmra.mrb[0].mxu0 %v69
    %v144 = vpop.f32.mrb[0].mxu0
    %v145 = vadd.f32 %v65, %v144
    %v146 = vpop.f32.mrb[0].mxu0
    %147 = vmatprep.mubr.f32.mxu0 0.0
    %148 = vmatmul.mubr.f32.gmra.mrb[0].mxu0 %v72
    %v149 = vpop.f32.mrb[0].mxu0
    %v150 = vadd.f32 %v65, %v149
    %v151 = vpop.f32.mrb[0].mxu0
    %152 = vdwg.mxu0
    %v153 = vld [vmem:[%s5] sm:$0x1]
    %v155 = vlaneseq
    %v156 = vshrl.u32 %v155, 7
    %v157 = vsub.s32 0, %v156
    %v158 = vrot.slane %v153, %v157
    %vm160 = vcmask 261120
    %v162 = vsel %vm160, 0.0, 0
    %164 = vmatprep.subr.mxu0 0.0
    %165 = vmatpush1.msra.mxu0 %v45
    %166 = vmatprep.subr.mxu0 0.0
    %167 = vmatpush1.msra.mxu0 %v46
    %168 = vmatprep.subr.mxu0 0.0
    %169 = vmatpush1.msra.mxu0 %v47
    %170 = vmatprep.subr.mxu0 0.0
    %171 = vmatpush1.msra.mxu0 %v48
    %172 = vmatprep.subr.mxu0 0.0
    %173 = vmatpush1.msra.mxu0 0.0
    %174 = vmatprep.subr.mxu0 0.0
    %175 = vmatpush1.msra.mxu0 0.0
    %176 = vmatprep.subr.mxu0 0.0
    %177 = vmatpush1.msra.mxu0 0.0
    %178 = vmatprep.subr.mxu0 0.0
    %179 = vmatpush1.msra.mxu0 0.0
    %180 = vmatprep.subr.mxu0 0.0
    %181 = vmatpush1.msra.mxu0 0.0
    %182 = vmatprep.subr.mxu0 0.0
    %183 = vmatpush1.msra.mxu0 0.0
    %184 = vmatprep.subr.mxu0 0.0
    %185 = vmatpush1.msra.mxu0 0.0
    %186 = vmatprep.subr.mxu0 0.0
    %187 = vmatpush1.msra.mxu0 0.0
    %188 = vmatprep.subr.mxu0 0.0
    %189 = vmatpush1.msra.mxu0 0.0
    %190 = vmatprep.subr.mxu0 0.0
    %191 = vmatpush1.msra.mxu0 0.0
    %192 = vmatprep.subr.mxu0 0.0
    %193 = vmatpush1.msra.mxu0 0.0
    %194 = vmatprep.subr.mxu0 0.0
    %195 = vmatpush1.msra.mxu0 0.0
    %196 = vmatprep.subr.mxu0 0.0
    %197 = vmatpush1.msra.mxu0 0.0
    %198 = vmatprep.subr.mxu0 0.0
    %199 = vmatpush1.msra.mxu0 0.0
    %200 = vmatprep.subr.mxu0 0.0
    %201 = vmatpush1.msra.mxu0 0.0
    %202 = vmatprep.subr.mxu0 0.0
    %203 = vmatpush1.msra.mxu0 0.0
    %204 = vmatprep.subr.mxu0 0.0
    %205 = vmatpush1.msra.mxu0 0.0
    %206 = vmatprep.subr.mxu0 0.0
    %207 = vmatpush1.msra.mxu0 0.0
    %208 = vmatprep.subr.mxu0 0.0
    %209 = vmatpush1.msra.mxu0 0.0
    %210 = vmatprep.subr.mxu0 0.0
    %211 = vmatpush1.msra.mxu0 0.0
    %212 = vmatprep.subr.mxu0 0.0
    %213 = vmatpush1.msra.mxu0 0.0
    %214 = vmatprep.subr.mxu0 0.0
    %215 = vmatpush1.msra.mxu0 0.0
    %216 = vmatprep.subr.mxu0 0.0
    %217 = vmatpush1.msra.mxu0 0.0
    %218 = vmatprep.subr.mxu0 0.0
    %219 = vmatpush1.msra.mxu0 0.0
    %220 = vmatprep.subr.mxu0 0.0
    %221 = vmatpush1.msra.mxu0 0.0
    %222 = vmatprep.subr.mxu0 0.0
    %223 = vmatpush1.msra.mxu0 0.0
    %224 = vmatprep.subr.mxu0 0.0
    %225 = vmatpush1.msra.mxu0 0.0
    %226 = vmatprep.subr.mxu0 0.0
    %227 = vmatpush1.msra.mxu0 0.0
    %228 = vmatprep.mubr.f32.mxu0 0.0
    %229 = vmatmul.mubr.f32.gmra.mrb[0].mxu0 %v162
    %v230 = vpop.f32.mrb[0].mxu0
    %v231 = vadd.f32 %v145, %v230
    %v232 = vpop.f32.mrb[0].mxu0
    %233 = vdwg.mxu0
    %v234 = vxor.u32 %v231, 2147483648
    %v235 = vmul.f32 %v234, 1.442695
    %v236 = vpow.pop %v235
    %v237 = vadd.f32 %v236, 1.0
    %v238 = vrcp.pop %v237
    %v239 = vmul.f32 1.0, %v238
    %v240 = vtanh.pop %v231
    %v241 = vmul.f32 %v239, 0.0
    %243 = vrot.lane.b32.xlu0 %v240, 32
    %v244 = vpop.permute.xlu0 %243
    %v246 = vmul.f32 %v239, %v244
    %248 = vrot.lane.b32.xlu0 %v246, 32
    %v249 = vpop.permute.xlu0 %248
    %v251 = vadd.f32 %v241, %v249
    %v252 = vtanh.pop %v251
    %254 = vrot.lane.b32.xlu0 %v252, 32
    %v255 = vpop.permute.xlu0 %254
    %v257 = vmul.f32 %v239, %v255
    %259 = vrot.lane.b32.xlu0 %v257, 64
    %v260 = vpop.permute.xlu0 %259
    %v262 = vsel %vm160, %v260, 0.0
    %vm263 = vcmask 523264
    %v265 = vsel %vm263, %v262, 0
    %267 = vmatprep.subr.mxu0 0.0
    %268 = vmatpush1.msra.mxu0 %v49
    %269 = vmatprep.subr.mxu0 0.0
    %270 = vmatpush1.msra.mxu0 %v50
    %271 = vmatprep.subr.mxu0 0.0
    %272 = vmatpush1.msra.mxu0 %v51
    %273 = vmatprep.subr.mxu0 0.0
    %274 = vmatpush1.msra.mxu0 %v52
    %275 = vmatprep.subr.mxu0 0.0
    %276 = vmatpush1.msra.mxu0 %v53
    %277 = vmatprep.subr.mxu0 0.0
    %278 = vmatpush1.msra.mxu0 %v54
    %279 = vmatprep.subr.mxu0 0.0
    %280 = vmatpush1.msra.mxu0 %v55
    %281 = vmatprep.subr.mxu0 0.0
    %282 = vmatpush1.msra.mxu0 %v56
    %283 = vmatprep.subr.mxu0 0.0
    %284 = vmatpush1.msra.mxu0 0.0
    %285 = vmatprep.subr.mxu0 0.0
    %286 = vmatpush1.msra.mxu0 0.0
    %287 = vmatprep.subr.mxu0 0.0
    %288 = vmatpush1.msra.mxu0 0.0
    %289 = vmatprep.subr.mxu0 0.0
    %290 = vmatpush1.msra.mxu0 0.0
    %291 = vmatprep.subr.mxu0 0.0
    %292 = vmatpush1.msra.mxu0 0.0
    %293 = vmatprep.subr.mxu0 0.0
    %294 = vmatpush1.msra.mxu0 0.0
    %295 = vmatprep.subr.mxu0 0.0
    %296 = vmatpush1.msra.mxu0 0.0
    %297 = vmatprep.subr.mxu0 0.0
    %298 = vmatpush1.msra.mxu0 0.0
    %299 = vmatprep.subr.mxu0 0.0
    %300 = vmatpush1.msra.mxu0 0.0
    %301 = vmatprep.subr.mxu0 0.0
    %302 = vmatpush1.msra.mxu0 0.0
    %303 = vmatprep.subr.mxu0 0.0
    %304 = vmatpush1.msra.mxu0 0.0
    %305 = vmatprep.subr.mxu0 0.0
    %306 = vmatpush1.msra.mxu0 0.0
    %307 = vmatprep.subr.mxu0 0.0
    %308 = vmatpush1.msra.mxu0 0.0
    %309 = vmatprep.subr.mxu0 0.0
    %310 = vmatpush1.msra.mxu0 0.0
    %311 = vmatprep.subr.mxu0 0.0
    %312 = vmatpush1.msra.mxu0 0.0
    %313 = vmatprep.subr.mxu0 0.0
    %314 = vmatpush1.msra.mxu0 0.0
    %315 = vmatprep.subr.mxu0 0.0
    %316 = vmatpush1.msra.mxu0 0.0
    %317 = vmatprep.subr.mxu0 0.0
    %318 = vmatpush1.msra.mxu0 0.0
    %319 = vmatprep.subr.mxu0 0.0
    %320 = vmatpush1.msra.mxu0 0.0
    %321 = vmatprep.subr.mxu0 0.0
    %322 = vmatpush1.msra.mxu0 0.0
    %323 = vmatprep.subr.mxu0 0.0
    %324 = vmatpush1.msra.mxu0 0.0
    %325 = vmatprep.subr.mxu0 0.0
    %326 = vmatpush1.msra.mxu0 0.0
    %327 = vmatprep.subr.mxu0 0.0
    %328 = vmatpush1.msra.mxu0 0.0
    %329 = vmatprep.subr.mxu0 0.0
    %330 = vmatpush1.msra.mxu0 0.0
    %331 = vmatprep.mubr.f32.mxu0 0.0
    %332 = vmatmul.mubr.f32.gmra.mrb[0].mxu0 %v265
    %v333 = vpop.f32.mrb[0].mxu0
    %v334 = vadd.f32 %v158, %v333
    %v335 = vpop.f32.mrb[0].mxu0
    %336 = vdwg.mxu0
    %v337 = vxor.u32 %v334, 2147483648
    %v338 = vmul.f32 %v337, 1.442695
    %v339 = vpow.pop %v338
    %v340 = vadd.f32 %v339, 1.0
    %v341 = vrcp.pop %v340
    %v342 = vmul.f32 1.0, %v341
    %v343 = vtanh.pop %v334
    %v344 = vmul.f32 %v342, 0.0
    %346 = vrot.lane.b32.xlu0 %v343, 32
    %v347 = vpop.permute.xlu0 %346
    %v349 = vmul.f32 %v342, %v347
    %351 = vrot.lane.b32.xlu0 %v349, 32
    %v352 = vpop.permute.xlu0 %351
    %v354 = vadd.f32 %v344, %v352
    %v355 = vtanh.pop %v354
    %357 = vrot.lane.b32.xlu0 %v355, 32
    %v358 = vpop.permute.xlu0 %357
    %v360 = vmul.f32 %v342, %v358
    %v362 = vrot.slane %v145, 2
    %v364 = vsel %vm160, %v260, 0
    %366 = vmatprep.subr.mxu0 0.0
    %367 = vmatpush1.msra.mxu0 %v45
    %368 = vmatprep.subr.mxu0 0.0
    %369 = vmatpush1.msra.mxu0 %v46
    %370 = vmatprep.subr.mxu0 0.0
    %371 = vmatpush1.msra.mxu0 %v47
    %372 = vmatprep.subr.mxu0 0.0
    %373 = vmatpush1.msra.mxu0 %v48
    %374 = vmatprep.subr.mxu0 0.0
    %375 = vmatpush1.msra.mxu0 0.0
    %376 = vmatprep.subr.mxu0 0.0
    %377 = vmatpush1.msra.mxu0 0.0
    %378 = vmatprep.subr.mxu0 0.0
    %379 = vmatpush1.msra.mxu0 0.0
    %380 = vmatprep.subr.mxu0 0.0
    %381 = vmatpush1.msra.mxu0 0.0
    %382 = vmatprep.subr.mxu0 0.0
    %383 = vmatpush1.msra.mxu0 0.0
    %384 = vmatprep.subr.mxu0 0.0
    %385 = vmatpush1.msra.mxu0 0.0
    %386 = vmatprep.subr.mxu0 0.0
    %387 = vmatpush1.msra.mxu0 0.0
    %388 = vmatprep.subr.mxu0 0.0
    %389 = vmatpush1.msra.mxu0 0.0
    %390 = vmatprep.subr.mxu0 0.0
    %391 = vmatpush1.msra.mxu0 0.0
    %392 = vmatprep.subr.mxu0 0.0
    %393 = vmatpush1.msra.mxu0 0.0
    %394 = vmatprep.subr.mxu0 0.0
    %395 = vmatpush1.msra.mxu0 0.0
    %396 = vmatprep.subr.mxu0 0.0
    %397 = vmatpush1.msra.mxu0 0.0
    %398 = vmatprep.subr.mxu0 0.0
    %399 = vmatpush1.msra.mxu0 0.0
    %400 = vmatprep.subr.mxu0 0.0
    %401 = vmatpush1.msra.mxu0 0.0
    %402 = vmatprep.subr.mxu0 0.0
    %403 = vmatpush1.msra.mxu0 0.0
    %404 = vmatprep.subr.mxu0 0.0
    %405 = vmatpush1.msra.mxu0 0.0
    %406 = vmatprep.subr.mxu0 0.0
    %407 = vmatpush1.msra.mxu0 0.0
    %408 = vmatprep.subr.mxu0 0.0
    %409 = vmatpush1.msra.mxu0 0.0
    %410 = vmatprep.subr.mxu0 0.0
    %411 = vmatpush1.msra.mxu0 0.0
    %412 = vmatprep.subr.mxu0 0.0
    %413 = vmatpush1.msra.mxu0 0.0
    %414 = vmatprep.subr.mxu0 0.0
    %415 = vmatpush1.msra.mxu0 0.0
    %416 = vmatprep.subr.mxu0 0.0
    %417 = vmatpush1.msra.mxu0 0.0
    %418 = vmatprep.subr.mxu0 0.0
    %419 = vmatpush1.msra.mxu0 0.0
    %420 = vmatprep.subr.mxu0 0.0
    %421 = vmatpush1.msra.mxu0 0.0
    %422 = vmatprep.subr.mxu0 0.0
    %423 = vmatpush1.msra.mxu0 0.0
    %424 = vmatprep.subr.mxu0 0.0
    %425 = vmatpush1.msra.mxu0 0.0
    %426 = vmatprep.subr.mxu0 0.0
    %427 = vmatpush1.msra.mxu0 0.0
    %428 = vmatprep.subr.mxu0 0.0
    %429 = vmatpush1.msra.mxu0 0.0
    %430 = vmatprep.mubr.f32.mxu0 0.0
    %431 = vmatmul.mubr.f32.gmra.mrb[0].mxu0 %v364
    %v432 = vpop.f32.mrb[0].mxu0
    %v433 = vadd.f32 %v362, %v432
    %v434 = vpop.f32.mrb[0].mxu0
    %435 = vdwg.mxu0
    %v436 = vxor.u32 %v433, 2147483648
    %v437 = vmul.f32 %v436, 1.442695
    %v438 = vpow.pop %v437
    %v439 = vadd.f32 %v438, 1.0
    %v440 = vrcp.pop %v439
    %v441 = vmul.f32 1.0, %v440
    %v442 = vtanh.pop %v433
    %v443 = vmul.f32 %v441, %v251
    %445 = vrot.lane.b32.xlu0 %v442, 32
    %v446 = vpop.permute.xlu0 %445
    %v448 = vmul.f32 %v441, %v446
    %450 = vrot.lane.b32.xlu0 %v448, 32
    %v451 = vpop.permute.xlu0 %450
    %v453 = vadd.f32 %v443, %v451
    %v454 = vtanh.pop %v453
    %456 = vrot.lane.b32.xlu0 %v454, 32
    %v457 = vpop.permute.xlu0 %456
    %v459 = vmul.f32 %v441, %v457
    %461 = vrot.lane.b32.xlu0 %v459, 64
    %v462 = vpop.permute.xlu0 %461
    %465 = vrot.lane.b32.xlu0 %v360, 96
    %v466 = vpop.permute.xlu0 %465
    %v468 = vsel %vm160, %v462, %v466
    %v470 = vsel %vm263, %v468, 0
    %472 = vmatprep.subr.mxu0 0.0
    %473 = vmatpush1.msra.mxu0 %v49
    %474 = vmatprep.subr.mxu0 0.0
    %475 = vmatpush1.msra.mxu0 %v50
    %476 = vmatprep.subr.mxu0 0.0
    %477 = vmatpush1.msra.mxu0 %v51
    %478 = vmatprep.subr.mxu0 0.0
    %479 = vmatpush1.msra.mxu0 %v52
    %480 = vmatprep.subr.mxu0 0.0
    %481 = vmatpush1.msra.mxu0 %v53
    %482 = vmatprep.subr.mxu0 0.0
    %483 = vmatpush1.msra.mxu0 %v54
    %484 = vmatprep.subr.mxu0 0.0
    %485 = vmatpush1.msra.mxu0 %v55
    %486 = vmatprep.subr.mxu0 0.0
    %487 = vmatpush1.msra.mxu0 %v56
    %488 = vmatprep.subr.mxu0 0.0
    %489 = vmatpush1.msra.mxu0 0.0
    %490 = vmatprep.subr.mxu0 0.0
    %491 = vmatpush1.msra.mxu0 0.0
    %492 = vmatprep.subr.mxu0 0.0
    %493 = vmatpush1.msra.mxu0 0.0
    %494 = vmatprep.subr.mxu0 0.0
    %495 = vmatpush1.msra.mxu0 0.0
    %496 = vmatprep.subr.mxu0 0.0
    %497 = vmatpush1.msra.mxu0 0.0
    %498 = vmatprep.subr.mxu0 0.0
    %499 = vmatpush1.msra.mxu0 0.0
    %500 = vmatprep.subr.mxu0 0.0
    %501 = vmatpush1.msra.mxu0 0.0
    %502 = vmatprep.subr.mxu0 0.0
    %503 = vmatpush1.msra.mxu0 0.0
    %504 = vmatprep.subr.mxu0 0.0
    %505 = vmatpush1.msra.mxu0 0.0
    %506 = vmatprep.subr.mxu0 0.0
    %507 = vmatpush1.msra.mxu0 0.0
    %508 = vmatprep.subr.mxu0 0.0
    %509 = vmatpush1.msra.mxu0 0.0
    %510 = vmatprep.subr.mxu0 0.0
    %511 = vmatpush1.msra.mxu0 0.0
    %512 = vmatprep.subr.mxu0 0.0
    %513 = vmatpush1.msra.mxu0 0.0
    %514 = vmatprep.subr.mxu0 0.0
    %515 = vmatpush1.msra.mxu0 0.0
    %516 = vmatprep.subr.mxu0 0.0
    %517 = vmatpush1.msra.mxu0 0.0
    %518 = vmatprep.subr.mxu0 0.0
    %519 = vmatpush1.msra.mxu0 0.0
    %520 = vmatprep.subr.mxu0 0.0
    %521 = vmatpush1.msra.mxu0 0.0
    %522 = vmatprep.subr.mxu0 0.0
    %523 = vmatpush1.msra.mxu0 0.0
    %524 = vmatprep.subr.mxu0 0.0
    %525 = vmatpush1.msra.mxu0 0.0
    %526 = vmatprep.subr.mxu0 0.0
    %527 = vmatpush1.msra.mxu0 0.0
    %528 = vmatprep.subr.mxu0 0.0
    %529 = vmatpush1.msra.mxu0 0.0
    %530 = vmatprep.subr.mxu0 0.0
    %531 = vmatpush1.msra.mxu0 0.0
    %532 = vmatprep.subr.mxu0 0.0
    %533 = vmatpush1.msra.mxu0 0.0
    %534 = vmatprep.subr.mxu0 0.0
    %535 = vmatpush1.msra.mxu0 0.0
    %536 = vmatprep.mubr.f32.mxu0 0.0
    %537 = vmatmul.mubr.f32.gmra.mrb[0].mxu0 %v470
    %v538 = vpop.f32.mrb[0].mxu0
    %v539 = vadd.f32 %v158, %v538
    %v540 = vpop.f32.mrb[0].mxu0
    %541 = vdwg.mxu0
    %v542 = vxor.u32 %v539, 2147483648
    %v543 = vmul.f32 %v542, 1.442695
    %v544 = vpow.pop %v543
    %v545 = vadd.f32 %v544, 1.0
    %v546 = vrcp.pop %v545
    %v547 = vmul.f32 1.0, %v546
    %v548 = vtanh.pop %v539
    %v549 = vmul.f32 %v547, %v354
    %551 = vrot.lane.b32.xlu0 %v548, 32
    %v552 = vpop.permute.xlu0 %551
    %v554 = vmul.f32 %v547, %v552
    %556 = vrot.lane.b32.xlu0 %v554, 32
    %v557 = vpop.permute.xlu0 %556
    %v559 = vadd.f32 %v549, %v557
    %v560 = vtanh.pop %v559
    %562 = vrot.lane.b32.xlu0 %v560, 32
    %v563 = vpop.permute.xlu0 %562
    %v565 = vmul.f32 %v547, %v563
    %v566 = vrot.slane %v145, 4
    %v568 = vsel %vm160, %v462, 0
    %570 = vmatprep.subr.mxu0 0.0
    %571 = vmatpush1.msra.mxu0 %v45
    %572 = vmatprep.subr.mxu0 0.0
    %573 = vmatpush1.msra.mxu0 %v46
    %574 = vmatprep.subr.mxu0 0.0
    %575 = vmatpush1.msra.mxu0 %v47
    %576 = vmatprep.subr.mxu0 0.0
    %577 = vmatpush1.msra.mxu0 %v48
    %578 = vmatprep.subr.mxu0 0.0
    %579 = vmatpush1.msra.mxu0 0.0
    %580 = vmatprep.subr.mxu0 0.0
    %581 = vmatpush1.msra.mxu0 0.0
    %582 = vmatprep.subr.mxu0 0.0
    %583 = vmatpush1.msra.mxu0 0.0
    %584 = vmatprep.subr.mxu0 0.0
    %585 = vmatpush1.msra.mxu0 0.0
    %586 = vmatprep.subr.mxu0 0.0
    %587 = vmatpush1.msra.mxu0 0.0
    %588 = vmatprep.subr.mxu0 0.0
    %589 = vmatpush1.msra.mxu0 0.0
    %590 = vmatprep.subr.mxu0 0.0
    %591 = vmatpush1.msra.mxu0 0.0
    %592 = vmatprep.subr.mxu0 0.0
    %593 = vmatpush1.msra.mxu0 0.0
    %594 = vmatprep.subr.mxu0 0.0
    %595 = vmatpush1.msra.mxu0 0.0
    %596 = vmatprep.subr.mxu0 0.0
    %597 = vmatpush1.msra.mxu0 0.0
    %598 = vmatprep.subr.mxu0 0.0
    %599 = vmatpush1.msra.mxu0 0.0
    %600 = vmatprep.subr.mxu0 0.0
    %601 = vmatpush1.msra.mxu0 0.0
    %602 = vmatprep.subr.mxu0 0.0
    %603 = vmatpush1.msra.mxu0 0.0
    %604 = vmatprep.subr.mxu0 0.0
    %605 = vmatpush1.msra.mxu0 0.0
    %606 = vmatprep.subr.mxu0 0.0
    %607 = vmatpush1.msra.mxu0 0.0
    %608 = vmatprep.subr.mxu0 0.0
    %609 = vmatpush1.msra.mxu0 0.0
    %610 = vmatprep.subr.mxu0 0.0
    %611 = vmatpush1.msra.mxu0 0.0
    %612 = vmatprep.subr.mxu0 0.0
    %613 = vmatpush1.msra.mxu0 0.0
    %614 = vmatprep.subr.mxu0 0.0
    %615 = vmatpush1.msra.mxu0 0.0
    %616 = vmatprep.subr.mxu0 0.0
    %617 = vmatpush1.msra.mxu0 0.0
    %618 = vmatprep.subr.mxu0 0.0
    %619 = vmatpush1.msra.mxu0 0.0
    %620 = vmatprep.subr.mxu0 0.0
    %621 = vmatpush1.msra.mxu0 0.0
    %622 = vmatprep.subr.mxu0 0.0
    %623 = vmatpush1.msra.mxu0 0.0
    %624 = vmatprep.subr.mxu0 0.0
    %625 = vmatpush1.msra.mxu0 0.0
    %626 = vmatprep.subr.mxu0 0.0
    %627 = vmatpush1.msra.mxu0 0.0
    %628 = vmatprep.subr.mxu0 0.0
    %629 = vmatpush1.msra.mxu0 0.0
    %630 = vmatprep.subr.mxu0 0.0
    %631 = vmatpush1.msra.mxu0 0.0
    %632 = vmatprep.subr.mxu0 0.0
    %633 = vmatpush1.msra.mxu0 0.0
    %634 = vmatprep.mubr.f32.mxu0 0.0
    %635 = vmatmul.mubr.f32.gmra.mrb[0].mxu0 %v568
    %v636 = vpop.f32.mrb[0].mxu0
    %v637 = vadd.f32 %v566, %v636
    %v638 = vpop.f32.mrb[0].mxu0
    %639 = vdwg.mxu0
    %v640 = vxor.u32 %v637, 2147483648
    %v641 = vmul.f32 %v640, 1.442695
    %v642 = vpow.pop %v641
    %v643 = vadd.f32 %v642, 1.0
    %v644 = vrcp.pop %v643
    %v645 = vmul.f32 1.0, %v644
    %v646 = vtanh.pop %v637
    %v647 = vmul.f32 %v645, %v453
    %649 = vrot.lane.b32.xlu0 %v646, 32
    %v650 = vpop.permute.xlu0 %649
    %v652 = vmul.f32 %v645, %v650
    %654 = vrot.lane.b32.xlu0 %v652, 32
    %v655 = vpop.permute.xlu0 %654
    %v657 = vadd.f32 %v647, %v655
    %v658 = vtanh.pop %v657
    %660 = vrot.lane.b32.xlu0 %v658, 32
    %v661 = vpop.permute.xlu0 %660
    %v663 = vmul.f32 %v645, %v661
    %665 = vrot.lane.b32.xlu0 %v663, 64
    %v666 = vpop.permute.xlu0 %665
    %669 = vrot.lane.b32.xlu0 %v565, 96
    %v670 = vpop.permute.xlu0 %669
    %v672 = vsel %vm160, %v666, %v670
    %v674 = vsel %vm263, %v672, 0
    %676 = vmatprep.subr.mxu0 0.0
    %677 = vmatpush1.msra.mxu0 %v49
    %678 = vmatprep.subr.mxu0 0.0
    %679 = vmatpush1.msra.mxu0 %v50
    %680 = vmatprep.subr.mxu0 0.0
    %681 = vmatpush1.msra.mxu0 %v51
    %682 = vmatprep.subr.mxu0 0.0
    %683 = vmatpush1.msra.mxu0 %v52
    %684 = vmatprep.subr.mxu0 0.0
    %685 = vmatpush1.msra.mxu0 %v53
    %686 = vmatprep.subr.mxu0 0.0
    %687 = vmatpush1.msra.mxu0 %v54
    %688 = vmatprep.subr.mxu0 0.0
    %689 = vmatpush1.msra.mxu0 %v55
    %690 = vmatprep.subr.mxu0 0.0
    %691 = vmatpush1.msra.mxu0 %v56
    %692 = vmatprep.subr.mxu0 0.0
    %693 = vmatpush1.msra.mxu0 0.0
    %694 = vmatprep.subr.mxu0 0.0
    %695 = vmatpush1.msra.mxu0 0.0
    %696 = vmatprep.subr.mxu0 0.0
    %697 = vmatpush1.msra.mxu0 0.0
    %698 = vmatprep.subr.mxu0 0.0
    %699 = vmatpush1.msra.mxu0 0.0
    %700 = vmatprep.subr.mxu0 0.0
    %701 = vmatpush1.msra.mxu0 0.0
    %702 = vmatprep.subr.mxu0 0.0
    %703 = vmatpush1.msra.mxu0 0.0
    %704 = vmatprep.subr.mxu0 0.0
    %705 = vmatpush1.msra.mxu0 0.0
    %706 = vmatprep.subr.mxu0 0.0
    %707 = vmatpush1.msra.mxu0 0.0
    %708 = vmatprep.subr.mxu0 0.0
    %709 = vmatpush1.msra.mxu0 0.0
    %710 = vmatprep.subr.mxu0 0.0
    %711 = vmatpush1.msra.mxu0 0.0
    %712 = vmatprep.subr.mxu0 0.0
    %713 = vmatpush1.msra.mxu0 0.0
    %714 = vmatprep.subr.mxu0 0.0
    %715 = vmatpush1.msra.mxu0 0.0
    %716 = vmatprep.subr.mxu0 0.0
    %717 = vmatpush1.msra.mxu0 0.0
    %718 = vmatprep.subr.mxu0 0.0
    %719 = vmatpush1.msra.mxu0 0.0
    %720 = vmatprep.subr.mxu0 0.0
    %721 = vmatpush1.msra.mxu0 0.0
    %722 = vmatprep.subr.mxu0 0.0
    %723 = vmatpush1.msra.mxu0 0.0
    %724 = vmatprep.subr.mxu0 0.0
    %725 = vmatpush1.msra.mxu0 0.0
    %726 = vmatprep.subr.mxu0 0.0
    %727 = vmatpush1.msra.mxu0 0.0
    %728 = vmatprep.subr.mxu0 0.0
    %729 = vmatpush1.msra.mxu0 0.0
    %730 = vmatprep.subr.mxu0 0.0
    %731 = vmatpush1.msra.mxu0 0.0
    %732 = vmatprep.subr.mxu0 0.0
    %733 = vmatpush1.msra.mxu0 0.0
    %734 = vmatprep.subr.mxu0 0.0
    %735 = vmatpush1.msra.mxu0 0.0
    %736 = vmatprep.subr.mxu0 0.0
    %737 = vmatpush1.msra.mxu0 0.0
    %738 = vmatprep.subr.mxu0 0.0
    %739 = vmatpush1.msra.mxu0 0.0
    %740 = vmatprep.mubr.f32.mxu0 0.0
    %741 = vmatmul.mubr.f32.gmra.mrb[0].mxu0 %v674
    %v742 = vpop.f32.mrb[0].mxu0
    %v743 = vadd.f32 %v158, %v742
    %v744 = vpop.f32.mrb[0].mxu0
    %745 = vdwg.mxu0
    %v746 = vxor.u32 %v743, 2147483648
    %v747 = vmul.f32 %v746, 1.442695
    %v748 = vpow.pop %v747
    %v749 = vadd.f32 %v748, 1.0
    %v750 = vrcp.pop %v749
    %v751 = vmul.f32 1.0, %v750
    %v752 = vtanh.pop %v743
    %v753 = vmul.f32 %v751, %v559
    %755 = vrot.lane.b32.xlu0 %v752, 32
    %v756 = vpop.permute.xlu0 %755
    %v758 = vmul.f32 %v751, %v756
    %760 = vrot.lane.b32.xlu0 %v758, 32
    %v761 = vpop.permute.xlu0 %760
    %v763 = vadd.f32 %v753, %v761
    %v764 = vtanh.pop %v763
    %766 = vrot.lane.b32.xlu0 %v764, 32
    %v767 = vpop.permute.xlu0 %766
    %v769 = vmul.f32 %v751, %v767
    %v770 = vrot.slane %v145, 6
    %v772 = vsel %vm160, %v666, 0
    %774 = vmatprep.subr.mxu0 0.0
    %775 = vmatpush1.msra.mxu0 %v45
    %776 = vmatprep.subr.mxu0 0.0
    %777 = vmatpush1.msra.mxu0 %v46
    %778 = vmatprep.subr.mxu0 0.0
    %779 = vmatpush1.msra.mxu0 %v47
    %780 = vmatprep.subr.mxu0 0.0
    %781 = vmatpush1.msra.mxu0 %v48
    %782 = vmatprep.subr.mxu0 0.0
    %783 = vmatpush1.msra.mxu0 0.0
    %784 = vmatprep.subr.mxu0 0.0
    %785 = vmatpush1.msra.mxu0 0.0
    %786 = vmatprep.subr.mxu0 0.0
    %787 = vmatpush1.msra.mxu0 0.0
    %788 = vmatprep.subr.mxu0 0.0
    %789 = vmatpush1.msra.mxu0 0.0
    %790 = vmatprep.subr.mxu0 0.0
    %791 = vmatpush1.msra.mxu0 0.0
    %792 = vmatprep.subr.mxu0 0.0
    %793 = vmatpush1.msra.mxu0 0.0
    %794 = vmatprep.subr.mxu0 0.0
    %795 = vmatpush1.msra.mxu0 0.0
    %796 = vmatprep.subr.mxu0 0.0
    %797 = vmatpush1.msra.mxu0 0.0
    %798 = vmatprep.subr.mxu0 0.0
    %799 = vmatpush1.msra.mxu0 0.0
    %800 = vmatprep.subr.mxu0 0.0
    %801 = vmatpush1.msra.mxu0 0.0
    %802 = vmatprep.subr.mxu0 0.0
    %803 = vmatpush1.msra.mxu0 0.0
    %804 = vmatprep.subr.mxu0 0.0
    %805 = vmatpush1.msra.mxu0 0.0
    %806 = vmatprep.subr.mxu0 0.0
    %807 = vmatpush1.msra.mxu0 0.0
    %808 = vmatprep.subr.mxu0 0.0
    %809 = vmatpush1.msra.mxu0 0.0
    %810 = vmatprep.subr.mxu0 0.0
    %811 = vmatpush1.msra.mxu0 0.0
    %812 = vmatprep.subr.mxu0 0.0
    %813 = vmatpush1.msra.mxu0 0.0
    %814 = vmatprep.subr.mxu0 0.0
    %815 = vmatpush1.msra.mxu0 0.0
    %816 = vmatprep.subr.mxu0 0.0
    %817 = vmatpush1.msra.mxu0 0.0
    %818 = vmatprep.subr.mxu0 0.0
    %819 = vmatpush1.msra.mxu0 0.0
    %820 = vmatprep.subr.mxu0 0.0
    %821 = vmatpush1.msra.mxu0 0.0
    %822 = vmatprep.subr.mxu0 0.0
    %823 = vmatpush1.msra.mxu0 0.0
    %824 = vmatprep.subr.mxu0 0.0
    %825 = vmatpush1.msra.mxu0 0.0
    %826 = vmatprep.subr.mxu0 0.0
    %827 = vmatpush1.msra.mxu0 0.0
    %828 = vmatprep.subr.mxu0 0.0
    %829 = vmatpush1.msra.mxu0 0.0
    %830 = vmatprep.subr.mxu0 0.0
    %831 = vmatpush1.msra.mxu0 0.0
    %832 = vmatprep.subr.mxu0 0.0
    %833 = vmatpush1.msra.mxu0 0.0
    %834 = vmatprep.subr.mxu0 0.0
    %835 = vmatpush1.msra.mxu0 0.0
    %836 = vmatprep.subr.mxu0 0.0
    %837 = vmatpush1.msra.mxu0 0.0
    %838 = vmatprep.mubr.f32.mxu0 0.0
    %839 = vmatmul.mubr.f32.gmra.mrb[0].mxu0 %v772
    %v840 = vpop.f32.mrb[0].mxu0
    %v841 = vadd.f32 %v770, %v840
    %v842 = vpop.f32.mrb[0].mxu0
    %843 = vdwg.mxu0
    %v844 = vxor.u32 %v841, 2147483648
    %v845 = vmul.f32 %v844, 1.442695
    %v846 = vpow.pop %v845
    %v847 = vadd.f32 %v846, 1.0
    %v848 = vrcp.pop %v847
    %v849 = vmul.f32 1.0, %v848
    %v850 = vtanh.pop %v841
    %v851 = vmul.f32 %v849, %v657
    %853 = vrot.lane.b32.xlu0 %v850, 32
    %v854 = vpop.permute.xlu0 %853
    %v856 = vmul.f32 %v849, %v854
    %858 = vrot.lane.b32.xlu0 %v856, 32
    %v859 = vpop.permute.xlu0 %858
    %v861 = vadd.f32 %v851, %v859
    %v862 = vtanh.pop %v861
    %864 = vrot.lane.b32.xlu0 %v862, 32
    %v865 = vpop.permute.xlu0 %864
    %v867 = vmul.f32 %v849, %v865
    %869 = vrot.lane.b32.xlu0 %v867, 64
    %v870 = vpop.permute.xlu0 %869
    %873 = vrot.lane.b32.xlu0 %v769, 96
    %v874 = vpop.permute.xlu0 %873
    %v876 = vsel %vm160, %v870, %v874
    %v878 = vsel %vm263, %v876, 0
    %880 = vmatprep.subr.mxu0 0.0
    %881 = vmatpush1.msra.mxu0 %v49
    %882 = vmatprep.subr.mxu0 0.0
    %883 = vmatpush1.msra.mxu0 %v50
    %884 = vmatprep.subr.mxu0 0.0
    %885 = vmatpush1.msra.mxu0 %v51
    %886 = vmatprep.subr.mxu0 0.0
    %887 = vmatpush1.msra.mxu0 %v52
    %888 = vmatprep.subr.mxu0 0.0
    %889 = vmatpush1.msra.mxu0 %v53
    %890 = vmatprep.subr.mxu0 0.0
    %891 = vmatpush1.msra.mxu0 %v54
    %892 = vmatprep.subr.mxu0 0.0
    %893 = vmatpush1.msra.mxu0 %v55
    %894 = vmatprep.subr.mxu0 0.0
    %895 = vmatpush1.msra.mxu0 %v56
    %896 = vmatprep.subr.mxu0 0.0
    %897 = vmatpush1.msra.mxu0 0.0
    %898 = vmatprep.subr.mxu0 0.0
    %899 = vmatpush1.msra.mxu0 0.0
    %900 = vmatprep.subr.mxu0 0.0
    %901 = vmatpush1.msra.mxu0 0.0
    %902 = vmatprep.subr.mxu0 0.0
    %903 = vmatpush1.msra.mxu0 0.0
    %904 = vmatprep.subr.mxu0 0.0
    %905 = vmatpush1.msra.mxu0 0.0
    %906 = vmatprep.subr.mxu0 0.0
    %907 = vmatpush1.msra.mxu0 0.0
    %908 = vmatprep.subr.mxu0 0.0
    %909 = vmatpush1.msra.mxu0 0.0
    %910 = vmatprep.subr.mxu0 0.0
    %911 = vmatpush1.msra.mxu0 0.0
    %912 = vmatprep.subr.mxu0 0.0
    %913 = vmatpush1.msra.mxu0 0.0
    %914 = vmatprep.subr.mxu0 0.0
    %915 = vmatpush1.msra.mxu0 0.0
    %916 = vmatprep.subr.mxu0 0.0
    %917 = vmatpush1.msra.mxu0 0.0
    %918 = vmatprep.subr.mxu0 0.0
    %919 = vmatpush1.msra.mxu0 0.0
    %920 = vmatprep.subr.mxu0 0.0
    %921 = vmatpush1.msra.mxu0 0.0
    %922 = vmatprep.subr.mxu0 0.0
    %923 = vmatpush1.msra.mxu0 0.0
    %924 = vmatprep.subr.mxu0 0.0
    %925 = vmatpush1.msra.mxu0 0.0
    %926 = vmatprep.subr.mxu0 0.0
    %927 = vmatpush1.msra.mxu0 0.0
    %928 = vmatprep.subr.mxu0 0.0
    %929 = vmatpush1.msra.mxu0 0.0
    %930 = vmatprep.subr.mxu0 0.0
    %931 = vmatpush1.msra.mxu0 0.0
    %932 = vmatprep.subr.mxu0 0.0
    %933 = vmatpush1.msra.mxu0 0.0
    %934 = vmatprep.subr.mxu0 0.0
    %935 = vmatpush1.msra.mxu0 0.0
    %936 = vmatprep.subr.mxu0 0.0
    %937 = vmatpush1.msra.mxu0 0.0
    %938 = vmatprep.subr.mxu0 0.0
    %939 = vmatpush1.msra.mxu0 0.0
    %940 = vmatprep.subr.mxu0 0.0
    %941 = vmatpush1.msra.mxu0 0.0
    %942 = vmatprep.subr.mxu0 0.0
    %943 = vmatpush1.msra.mxu0 0.0
    %944 = vmatprep.mubr.f32.mxu0 0.0
    %945 = vmatmul.mubr.f32.gmra.mrb[0].mxu0 %v878
    %v946 = vpop.f32.mrb[0].mxu0
    %v947 = vadd.f32 %v158, %v946
    %v948 = vpop.f32.mrb[0].mxu0
    %949 = vdwg.mxu0
    %v950 = vxor.u32 %v947, 2147483648
    %v951 = vmul.f32 %v950, 1.442695
    %v952 = vpow.pop %v951
    %v953 = vadd.f32 %v952, 1.0
    %v954 = vrcp.pop %v953
    %v955 = vmul.f32 1.0, %v954
    %v956 = vtanh.pop %v947
    %v957 = vmul.f32 %v955, %v763
    %959 = vrot.lane.b32.xlu0 %v956, 32
    %v960 = vpop.permute.xlu0 %959
    %v962 = vmul.f32 %v955, %v960
    %964 = vrot.lane.b32.xlu0 %v962, 32
    %v965 = vpop.permute.xlu0 %964
    %v967 = vadd.f32 %v957, %v965
    %v968 = vtanh.pop %v967
    %970 = vrot.lane.b32.xlu0 %v968, 32
    %v971 = vpop.permute.xlu0 %970
    %v973 = vmul.f32 %v955, %v971
    %v974 = vsel %vm160, %v870, 0
    %976 = vmatprep.subr.mxu0 0.0
    %977 = vmatpush1.msra.mxu0 %v45
    %978 = vmatprep.subr.mxu0 0.0
    %979 = vmatpush1.msra.mxu0 %v46
    %980 = vmatprep.subr.mxu0 0.0
    %981 = vmatpush1.msra.mxu0 %v47
    %982 = vmatprep.subr.mxu0 0.0
    %983 = vmatpush1.msra.mxu0 %v48
    %984 = vmatprep.subr.mxu0 0.0
    %985 = vmatpush1.msra.mxu0 0.0
    %986 = vmatprep.subr.mxu0 0.0
    %987 = vmatpush1.msra.mxu0 0.0
    %988 = vmatprep.subr.mxu0 0.0
    %989 = vmatpush1.msra.mxu0 0.0
    %990 = vmatprep.subr.mxu0 0.0
    %991 = vmatpush1.msra.mxu0 0.0
    %992 = vmatprep.subr.mxu0 0.0
    %993 = vmatpush1.msra.mxu0 0.0
    %994 = vmatprep.subr.mxu0 0.0
    %995 = vmatpush1.msra.mxu0 0.0
    %996 = vmatprep.subr.mxu0 0.0
    %997 = vmatpush1.msra.mxu0 0.0
    %998 = vmatprep.subr.mxu0 0.0
    %999 = vmatpush1.msra.mxu0 0.0
    %1000 = vmatprep.subr.mxu0 0.0
    %1001 = vmatpush1.msra.mxu0 0.0
    %1002 = vmatprep.subr.mxu0 0.0
    %1003 = vmatpush1.msra.mxu0 0.0
    %1004 = vmatprep.subr.mxu0 0.0
    %1005 = vmatpush1.msra.mxu0 0.0
    %1006 = vmatprep.subr.mxu0 0.0
    %1007 = vmatpush1.msra.mxu0 0.0
    %1008 = vmatprep.subr.mxu0 0.0
    %1009 = vmatpush1.msra.mxu0 0.0
    %1010 = vmatprep.subr.mxu0 0.0
    %1011 = vmatpush1.msra.mxu0 0.0
    %1012 = vmatprep.subr.mxu0 0.0
    %1013 = vmatpush1.msra.mxu0 0.0
    %1014 = vmatprep.subr.mxu0 0.0
    %1015 = vmatpush1.msra.mxu0 0.0
    %1016 = vmatprep.subr.mxu0 0.0
    %1017 = vmatpush1.msra.mxu0 0.0
    %1018 = vmatprep.subr.mxu0 0.0
    %1019 = vmatpush1.msra.mxu0 0.0
    %1020 = vmatprep.subr.mxu0 0.0
    %1021 = vmatpush1.msra.mxu0 0.0
    %1022 = vmatprep.subr.mxu0 0.0
    %1023 = vmatpush1.msra.mxu0 0.0
    %1024 = vmatprep.subr.mxu0 0.0
    %1025 = vmatpush1.msra.mxu0 0.0
    %1026 = vmatprep.subr.mxu0 0.0
    %1027 = vmatpush1.msra.mxu0 0.0
    %1028 = vmatprep.subr.mxu0 0.0
    %1029 = vmatpush1.msra.mxu0 0.0
    %1030 = vmatprep.subr.mxu0 0.0
    %1031 = vmatpush1.msra.mxu0 0.0
    %1032 = vmatprep.subr.mxu0 0.0
    %1033 = vmatpush1.msra.mxu0 0.0
    %1034 = vmatprep.subr.mxu0 0.0
    %1035 = vmatpush1.msra.mxu0 0.0
    %1036 = vmatprep.subr.mxu0 0.0
    %1037 = vmatpush1.msra.mxu0 0.0
    %1038 = vmatprep.subr.mxu0 0.0
    %1039 = vmatpush1.msra.mxu0 0.0
    %1040 = vmatprep.mubr.f32.mxu0 0.0
    %1041 = vmatmul.mubr.f32.gmra.mrb[0].mxu0 %v974
    %v1042 = vpop.f32.mrb[0].mxu0
    %v1043 = vadd.f32 %v150, %v1042
    %v1044 = vpop.f32.mrb[0].mxu0
    %1045 = vdwg.mxu0
    %v1046 = vxor.u32 %v1043, 2147483648
    %v1047 = vmul.f32 %v1046, 1.442695
    %v1048 = vpow.pop %v1047
    %v1049 = vadd.f32 %v1048, 1.0
    %v1050 = vrcp.pop %v1049
    %v1051 = vmul.f32 1.0, %v1050
    %v1052 = vtanh.pop %v1043
    %v1053 = vmul.f32 %v1051, %v861
    %1055 = vrot.lane.b32.xlu0 %v1052, 32
    %v1056 = vpop.permute.xlu0 %1055
    %v1058 = vmul.f32 %v1051, %v1056
    %1060 = vrot.lane.b32.xlu0 %v1058, 32
    %v1061 = vpop.permute.xlu0 %1060
    %v1063 = vadd.f32 %v1053, %v1061
    %v1064 = vtanh.pop %v1063
    %1066 = vrot.lane.b32.xlu0 %v1064, 32
    %v1067 = vpop.permute.xlu0 %1066
    %v1069 = vmul.f32 %v1051, %v1067
    %1071 = vrot.lane.b32.xlu0 %v1069, 64
    %v1072 = vpop.permute.xlu0 %1071
    %1075 = vrot.lane.b32.xlu0 %v973, 96
    %v1076 = vpop.permute.xlu0 %1075
    %v1078 = vsel %vm160, %v1072, %v1076
    %v1080 = vsel %vm263, %v1078, 0
    %1082 = vmatprep.subr.mxu0 0.0
    %1083 = vmatpush1.msra.mxu0 %v49
    %1084 = vmatprep.subr.mxu0 0.0
    %1085 = vmatpush1.msra.mxu0 %v50
    %1086 = vmatprep.subr.mxu0 0.0
    %1087 = vmatpush1.msra.mxu0 %v51
    %1088 = vmatprep.subr.mxu0 0.0
    %1089 = vmatpush1.msra.mxu0 %v52
    %1090 = vmatprep.subr.mxu0 0.0
    %1091 = vmatpush1.msra.mxu0 %v53
    %1092 = vmatprep.subr.mxu0 0.0
    %1093 = vmatpush1.msra.mxu0 %v54
    %1094 = vmatprep.subr.mxu0 0.0
    %1095 = vmatpush1.msra.mxu0 %v55
    %1096 = vmatprep.subr.mxu0 0.0
    %1097 = vmatpush1.msra.mxu0 %v56
    %1098 = vmatprep.subr.mxu0 0.0
    %1099 = vmatpush1.msra.mxu0 0.0
    %1100 = vmatprep.subr.mxu0 0.0
    %1101 = vmatpush1.msra.mxu0 0.0
    %1102 = vmatprep.subr.mxu0 0.0
    %1103 = vmatpush1.msra.mxu0 0.0
    %1104 = vmatprep.subr.mxu0 0.0
    %1105 = vmatpush1.msra.mxu0 0.0
    %1106 = vmatprep.subr.mxu0 0.0
    %1107 = vmatpush1.msra.mxu0 0.0
    %1108 = vmatprep.subr.mxu0 0.0
    %1109 = vmatpush1.msra.mxu0 0.0
    %1110 = vmatprep.subr.mxu0 0.0
    %1111 = vmatpush1.msra.mxu0 0.0
    %1112 = vmatprep.subr.mxu0 0.0
    %1113 = vmatpush1.msra.mxu0 0.0
    %1114 = vmatprep.subr.mxu0 0.0
    %1115 = vmatpush1.msra.mxu0 0.0
    %1116 = vmatprep.subr.mxu0 0.0
    %1117 = vmatpush1.msra.mxu0 0.0
    %1118 = vmatprep.subr.mxu0 0.0
    %1119 = vmatpush1.msra.mxu0 0.0
    %1120 = vmatprep.subr.mxu0 0.0
    %1121 = vmatpush1.msra.mxu0 0.0
    %1122 = vmatprep.subr.mxu0 0.0
    %1123 = vmatpush1.msra.mxu0 0.0
    %1124 = vmatprep.subr.mxu0 0.0
    %1125 = vmatpush1.msra.mxu0 0.0
    %1126 = vmatprep.subr.mxu0 0.0
    %1127 = vmatpush1.msra.mxu0 0.0
    %1128 = vmatprep.subr.mxu0 0.0
    %1129 = vmatpush1.msra.mxu0 0.0
    %1130 = vmatprep.subr.mxu0 0.0
    %1131 = vmatpush1.msra.mxu0 0.0
    %1132 = vmatprep.subr.mxu0 0.0
    %1133 = vmatpush1.msra.mxu0 0.0
    %1134 = vmatprep.subr.mxu0 0.0
    %1135 = vmatpush1.msra.mxu0 0.0
    %1136 = vmatprep.subr.mxu0 0.0
    %1137 = vmatpush1.msra.mxu0 0.0
    %1138 = vmatprep.subr.mxu0 0.0
    %1139 = vmatpush1.msra.mxu0 0.0
    %1140 = vmatprep.subr.mxu0 0.0
    %1141 = vmatpush1.msra.mxu0 0.0
    %1142 = vmatprep.subr.mxu0 0.0
    %1143 = vmatpush1.msra.mxu0 0.0
    %1144 = vmatprep.subr.mxu0 0.0
    %1145 = vmatpush1.msra.mxu0 0.0
    %1146 = vmatprep.mubr.f32.mxu0 0.0
    %1147 = vmatmul.mubr.f32.gmra.mrb[0].mxu0 %v1080
    %v1148 = vpop.f32.mrb[0].mxu0
    %v1149 = vadd.f32 %v158, %v1148
    %v1150 = vpop.f32.mrb[0].mxu0
    %1151 = vdwg.mxu0
    %v1152 = vxor.u32 %v1149, 2147483648
    %v1153 = vmul.f32 %v1152, 1.442695
    %v1154 = vpow.pop %v1153
    %v1155 = vadd.f32 %v1154, 1.0
    %v1156 = vrcp.pop %v1155
    %v1157 = vmul.f32 1.0, %v1156
    %v1158 = vtanh.pop %v1149
    %v1159 = vmul.f32 %v1157, %v967
    %1161 = vrot.lane.b32.xlu0 %v1158, 32
    %v1162 = vpop.permute.xlu0 %1161
    %v1164 = vmul.f32 %v1157, %v1162
    %1166 = vrot.lane.b32.xlu0 %v1164, 32
    %v1167 = vpop.permute.xlu0 %1166
    %v1169 = vadd.f32 %v1159, %v1167
    %v1170 = vtanh.pop %v1169
    %1172 = vrot.lane.b32.xlu0 %v1170, 32
    %v1173 = vpop.permute.xlu0 %1172
    %v1175 = vmul.f32 %v1157, %v1173
    %v1177 = vrot.slane %v150, 2
    %v1179 = vsel %vm160, %v1072, 0
    %1181 = vmatprep.subr.mxu0 0.0
    %1182 = vmatpush1.msra.mxu0 %v45
    %1183 = vmatprep.subr.mxu0 0.0
    %1184 = vmatpush1.msra.mxu0 %v46
    %1185 = vmatprep.subr.mxu0 0.0
    %1186 = vmatpush1.msra.mxu0 %v47
    %1187 = vmatprep.subr.mxu0 0.0
    %1188 = vmatpush1.msra.mxu0 %v48
    %1189 = vmatprep.subr.mxu0 0.0
    %1190 = vmatpush1.msra.mxu0 0.0
    %1191 = vmatprep.subr.mxu0 0.0
    %1192 = vmatpush1.msra.mxu0 0.0
    %1193 = vmatprep.subr.mxu0 0.0
    %1194 = vmatpush1.msra.mxu0 0.0
    %1195 = vmatprep.subr.mxu0 0.0
    %1196 = vmatpush1.msra.mxu0 0.0
    %1197 = vmatprep.subr.mxu0 0.0
    %1198 = vmatpush1.msra.mxu0 0.0
    %1199 = vmatprep.subr.mxu0 0.0
    %1200 = vmatpush1.msra.mxu0 0.0
    %1201 = vmatprep.subr.mxu0 0.0
    %1202 = vmatpush1.msra.mxu0 0.0
    %1203 = vmatprep.subr.mxu0 0.0
    %1204 = vmatpush1.msra.mxu0 0.0
    %1205 = vmatprep.subr.mxu0 0.0
    %1206 = vmatpush1.msra.mxu0 0.0
    %1207 = vmatprep.subr.mxu0 0.0
    %1208 = vmatpush1.msra.mxu0 0.0
    %1209 = vmatprep.subr.mxu0 0.0
    %1210 = vmatpush1.msra.mxu0 0.0
    %1211 = vmatprep.subr.mxu0 0.0
    %1212 = vmatpush1.msra.mxu0 0.0
    %1213 = vmatprep.subr.mxu0 0.0
    %1214 = vmatpush1.msra.mxu0 0.0
    %1215 = vmatprep.subr.mxu0 0.0
    %1216 = vmatpush1.msra.mxu0 0.0
    %1217 = vmatprep.subr.mxu0 0.0
    %1218 = vmatpush1.msra.mxu0 0.0
    %1219 = vmatprep.subr.mxu0 0.0
    %1220 = vmatpush1.msra.mxu0 0.0
    %1221 = vmatprep.subr.mxu0 0.0
    %1222 = vmatpush1.msra.mxu0 0.0
    %1223 = vmatprep.subr.mxu0 0.0
    %1224 = vmatpush1.msra.mxu0 0.0
    %1225 = vmatprep.subr.mxu0 0.0
    %1226 = vmatpush1.msra.mxu0 0.0
    %1227 = vmatprep.subr.mxu0 0.0
    %1228 = vmatpush1.msra.mxu0 0.0
    %1229 = vmatprep.subr.mxu0 0.0
    %1230 = vmatpush1.msra.mxu0 0.0
    %1231 = vmatprep.subr.mxu0 0.0
    %1232 = vmatpush1.msra.mxu0 0.0
    %1233 = vmatprep.subr.mxu0 0.0
    %1234 = vmatpush1.msra.mxu0 0.0
    %1235 = vmatprep.subr.mxu0 0.0
    %1236 = vmatpush1.msra.mxu0 0.0
    %1237 = vmatprep.subr.mxu0 0.0
    %1238 = vmatpush1.msra.mxu0 0.0
    %1239 = vmatprep.subr.mxu0 0.0
    %1240 = vmatpush1.msra.mxu0 0.0
    %1241 = vmatprep.subr.mxu0 0.0
    %1242 = vmatpush1.msra.mxu0 0.0
    %1243 = vmatprep.subr.mxu0 0.0
    %1244 = vmatpush1.msra.mxu0 0.0
    %1245 = vmatprep.mubr.f32.mxu0 0.0
    %1246 = vmatmul.mubr.f32.gmra.mrb[0].mxu0 %v1179
    %v1247 = vpop.f32.mrb[0].mxu0
    %v1248 = vadd.f32 %v1177, %v1247
    %v1249 = vpop.f32.mrb[0].mxu0
    %1250 = vdwg.mxu0
    %v1251 = vxor.u32 %v1248, 2147483648
    %v1252 = vmul.f32 %v1251, 1.442695
    %v1253 = vpow.pop %v1252
    %v1254 = vadd.f32 %v1253, 1.0
    %v1255 = vrcp.pop %v1254
    %v1256 = vmul.f32 1.0, %v1255
    %v1257 = vtanh.pop %v1248
    %v1258 = vmul.f32 %v1256, %v1063
    %1260 = vrot.lane.b32.xlu0 %v1257, 32
    %v1261 = vpop.permute.xlu0 %1260
    %v1263 = vmul.f32 %v1256, %v1261
    %1265 = vrot.lane.b32.xlu0 %v1263, 32
    %v1266 = vpop.permute.xlu0 %1265
    %v1268 = vadd.f32 %v1258, %v1266
    %v1269 = vtanh.pop %v1268
    %1271 = vrot.lane.b32.xlu0 %v1269, 32
    %v1272 = vpop.permute.xlu0 %1271
    %v1274 = vmul.f32 %v1256, %v1272
    %1276 = vrot.lane.b32.xlu0 %v1274, 64
    %v1277 = vpop.permute.xlu0 %1276
    %1280 = vrot.lane.b32.xlu0 %v1175, 96
    %v1281 = vpop.permute.xlu0 %1280
    %v1283 = vsel %vm160, %v1277, %v1281
    %v1285 = vsel %vm263, %v1283, 0
    %1287 = vmatprep.subr.mxu0 0.0
    %1288 = vmatpush1.msra.mxu0 %v49
    %1289 = vmatprep.subr.mxu0 0.0
    %1290 = vmatpush1.msra.mxu0 %v50
    %1291 = vmatprep.subr.mxu0 0.0
    %1292 = vmatpush1.msra.mxu0 %v51
    %1293 = vmatprep.subr.mxu0 0.0
    %1294 = vmatpush1.msra.mxu0 %v52
    %1295 = vmatprep.subr.mxu0 0.0
    %1296 = vmatpush1.msra.mxu0 %v53
    %1297 = vmatprep.subr.mxu0 0.0
    %1298 = vmatpush1.msra.mxu0 %v54
    %1299 = vmatprep.subr.mxu0 0.0
    %1300 = vmatpush1.msra.mxu0 %v55
    %1301 = vmatprep.subr.mxu0 0.0
    %1302 = vmatpush1.msra.mxu0 %v56
    %1303 = vmatprep.subr.mxu0 0.0
    %1304 = vmatpush1.msra.mxu0 0.0
    %1305 = vmatprep.subr.mxu0 0.0
    %1306 = vmatpush1.msra.mxu0 0.0
    %1307 = vmatprep.subr.mxu0 0.0
    %1308 = vmatpush1.msra.mxu0 0.0
    %1309 = vmatprep.subr.mxu0 0.0
    %1310 = vmatpush1.msra.mxu0 0.0
    %1311 = vmatprep.subr.mxu0 0.0
    %1312 = vmatpush1.msra.mxu0 0.0
    %1313 = vmatprep.subr.mxu0 0.0
    %1314 = vmatpush1.msra.mxu0 0.0
    %1315 = vmatprep.subr.mxu0 0.0
    %1316 = vmatpush1.msra.mxu0 0.0
    %1317 = vmatprep.subr.mxu0 0.0
    %1318 = vmatpush1.msra.mxu0 0.0
    %1319 = vmatprep.subr.mxu0 0.0
    %1320 = vmatpush1.msra.mxu0 0.0
    %1321 = vmatprep.subr.mxu0 0.0
    %1322 = vmatpush1.msra.mxu0 0.0
    %1323 = vmatprep.subr.mxu0 0.0
    %1324 = vmatpush1.msra.mxu0 0.0
    %1325 = vmatprep.subr.mxu0 0.0
    %1326 = vmatpush1.msra.mxu0 0.0
    %1327 = vmatprep.subr.mxu0 0.0
    %1328 = vmatpush1.msra.mxu0 0.0
    %1329 = vmatprep.subr.mxu0 0.0
    %1330 = vmatpush1.msra.mxu0 0.0
    %1331 = vmatprep.subr.mxu0 0.0
    %1332 = vmatpush1.msra.mxu0 0.0
    %1333 = vmatprep.subr.mxu0 0.0
    %1334 = vmatpush1.msra.mxu0 0.0
    %1335 = vmatprep.subr.mxu0 0.0
    %1336 = vmatpush1.msra.mxu0 0.0
    %1337 = vmatprep.subr.mxu0 0.0
    %1338 = vmatpush1.msra.mxu0 0.0
    %1339 = vmatprep.subr.mxu0 0.0
    %1340 = vmatpush1.msra.mxu0 0.0
    %1341 = vmatprep.subr.mxu0 0.0
    %1342 = vmatpush1.msra.mxu0 0.0
    %1343 = vmatprep.subr.mxu0 0.0
    %1344 = vmatpush1.msra.mxu0 0.0
    %1345 = vmatprep.subr.mxu0 0.0
    %1346 = vmatpush1.msra.mxu0 0.0
    %1347 = vmatprep.subr.mxu0 0.0
    %1348 = vmatpush1.msra.mxu0 0.0
    %1349 = vmatprep.subr.mxu0 0.0
    %1350 = vmatpush1.msra.mxu0 0.0
    %1351 = vmatprep.mubr.f32.mxu0 0.0
    %1352 = vmatmul.mubr.f32.gmra.mrb[0].mxu0 %v1285
    %v1353 = vpop.f32.mrb[0].mxu0
    %v1354 = vadd.f32 %v158, %v1353
    %v1355 = vpop.f32.mrb[0].mxu0
    %1356 = vdwg.mxu0
    %v1357 = vxor.u32 %v1354, 2147483648
    %v1358 = vmul.f32 %v1357, 1.442695
    %v1359 = vpow.pop %v1358
    %v1360 = vadd.f32 %v1359, 1.0
    %v1361 = vrcp.pop %v1360
    %v1362 = vmul.f32 1.0, %v1361
    %v1363 = vtanh.pop %v1354
    %v1364 = vmul.f32 %v1362, %v1169
    %1366 = vrot.lane.b32.xlu0 %v1363, 32
    %v1367 = vpop.permute.xlu0 %1366
    %v1369 = vmul.f32 %v1362, %v1367
    %1371 = vrot.lane.b32.xlu0 %v1369, 32
    %v1372 = vpop.permute.xlu0 %1371
    %v1374 = vadd.f32 %v1364, %v1372
    %v1375 = vtanh.pop %v1374
    %1377 = vrot.lane.b32.xlu0 %v1375, 32
    %v1378 = vpop.permute.xlu0 %1377
    %v1380 = vmul.f32 %v1362, %v1378
    %v1381 = vrot.slane %v150, 4
    %v1383 = vsel %vm160, %v1277, 0
    %1385 = vmatprep.subr.mxu0 0.0
    %1386 = vmatpush1.msra.mxu0 %v45
    %1387 = vmatprep.subr.mxu0 0.0
    %1388 = vmatpush1.msra.mxu0 %v46
    %1389 = vmatprep.subr.mxu0 0.0
    %1390 = vmatpush1.msra.mxu0 %v47
    %1391 = vmatprep.subr.mxu0 0.0
    %1392 = vmatpush1.msra.mxu0 %v48
    %1393 = vmatprep.subr.mxu0 0.0
    %1394 = vmatpush1.msra.mxu0 0.0
    %1395 = vmatprep.subr.mxu0 0.0
    %1396 = vmatpush1.msra.mxu0 0.0
    %1397 = vmatprep.subr.mxu0 0.0
    %1398 = vmatpush1.msra.mxu0 0.0
    %1399 = vmatprep.subr.mxu0 0.0
    %1400 = vmatpush1.msra.mxu0 0.0
    %1401 = vmatprep.subr.mxu0 0.0
    %1402 = vmatpush1.msra.mxu0 0.0
    %1403 = vmatprep.subr.mxu0 0.0
    %1404 = vmatpush1.msra.mxu0 0.0
    %1405 = vmatprep.subr.mxu0 0.0
    %1406 = vmatpush1.msra.mxu0 0.0
    %1407 = vmatprep.subr.mxu0 0.0
    %1408 = vmatpush1.msra.mxu0 0.0
    %1409 = vmatprep.subr.mxu0 0.0
    %1410 = vmatpush1.msra.mxu0 0.0
    %1411 = vmatprep.subr.mxu0 0.0
    %1412 = vmatpush1.msra.mxu0 0.0
    %1413 = vmatprep.subr.mxu0 0.0
    %1414 = vmatpush1.msra.mxu0 0.0
    %1415 = vmatprep.subr.mxu0 0.0
    %1416 = vmatpush1.msra.mxu0 0.0
    %1417 = vmatprep.subr.mxu0 0.0
    %1418 = vmatpush1.msra.mxu0 0.0
    %1419 = vmatprep.subr.mxu0 0.0
    %1420 = vmatpush1.msra.mxu0 0.0
    %1421 = vmatprep.subr.mxu0 0.0
    %1422 = vmatpush1.msra.mxu0 0.0
    %1423 = vmatprep.subr.mxu0 0.0
    %1424 = vmatpush1.msra.mxu0 0.0
    %1425 = vmatprep.subr.mxu0 0.0
    %1426 = vmatpush1.msra.mxu0 0.0
    %1427 = vmatprep.subr.mxu0 0.0
    %1428 = vmatpush1.msra.mxu0 0.0
    %1429 = vmatprep.subr.mxu0 0.0
    %1430 = vmatpush1.msra.mxu0 0.0
    %1431 = vmatprep.subr.mxu0 0.0
    %1432 = vmatpush1.msra.mxu0 0.0
    %1433 = vmatprep.subr.mxu0 0.0
    %1434 = vmatpush1.msra.mxu0 0.0
    %1435 = vmatprep.subr.mxu0 0.0
    %1436 = vmatpush1.msra.mxu0 0.0
    %1437 = vmatprep.subr.mxu0 0.0
    %1438 = vmatpush1.msra.mxu0 0.0
    %1439 = vmatprep.subr.mxu0 0.0
    %1440 = vmatpush1.msra.mxu0 0.0
    %1441 = vmatprep.subr.mxu0 0.0
    %1442 = vmatpush1.msra.mxu0 0.0
    %1443 = vmatprep.subr.mxu0 0.0
    %1444 = vmatpush1.msra.mxu0 0.0
    %1445 = vmatprep.subr.mxu0 0.0
    %1446 = vmatpush1.msra.mxu0 0.0
    %1447 = vmatprep.subr.mxu0 0.0
    %1448 = vmatpush1.msra.mxu0 0.0
    %1449 = vmatprep.mubr.f32.mxu0 0.0
    %1450 = vmatmul.mubr.f32.gmra.mrb[0].mxu0 %v1383
    %v1451 = vpop.f32.mrb[0].mxu0
    %v1452 = vadd.f32 %v1381, %v1451
    %v1453 = vpop.f32.mrb[0].mxu0
    %1454 = vdwg.mxu0
    %v1455 = vxor.u32 %v1452, 2147483648
    %v1456 = vmul.f32 %v1455, 1.442695
    %v1457 = vpow.pop %v1456
    %v1458 = vadd.f32 %v1457, 1.0
    %v1459 = vrcp.pop %v1458
    %v1460 = vmul.f32 1.0, %v1459
    %v1461 = vtanh.pop %v1452
    %v1462 = vmul.f32 %v1460, %v1268
    %1464 = vrot.lane.b32.xlu0 %v1461, 32
    %v1465 = vpop.permute.xlu0 %1464
    %v1467 = vmul.f32 %v1460, %v1465
    %1469 = vrot.lane.b32.xlu0 %v1467, 32
    %v1470 = vpop.permute.xlu0 %1469
    %v1472 = vadd.f32 %v1462, %v1470
    %v1473 = vtanh.pop %v1472
    %1475 = vrot.lane.b32.xlu0 %v1473, 32
    %v1476 = vpop.permute.xlu0 %1475
    %v1478 = vmul.f32 %v1460, %v1476
    %1480 = vrot.lane.b32.xlu0 %v1478, 64
    %v1481 = vpop.permute.xlu0 %1480
    %1484 = vrot.lane.b32.xlu0 %v1380, 96
    %v1485 = vpop.permute.xlu0 %1484
    %v1487 = vsel %vm160, %v1481, %v1485
    %v1489 = vsel %vm263, %v1487, 0
    %1491 = vmatprep.subr.mxu0 0.0
    %1492 = vmatpush1.msra.mxu0 %v49
    %1493 = vmatprep.subr.mxu0 0.0
    %1494 = vmatpush1.msra.mxu0 %v50
    %1495 = vmatprep.subr.mxu0 0.0
    %1496 = vmatpush1.msra.mxu0 %v51
    %1497 = vmatprep.subr.mxu0 0.0
    %1498 = vmatpush1.msra.mxu0 %v52
    %1499 = vmatprep.subr.mxu0 0.0
    %1500 = vmatpush1.msra.mxu0 %v53
    %1501 = vmatprep.subr.mxu0 0.0
    %1502 = vmatpush1.msra.mxu0 %v54
    %1503 = vmatprep.subr.mxu0 0.0
    %1504 = vmatpush1.msra.mxu0 %v55
    %1505 = vmatprep.subr.mxu0 0.0
    %1506 = vmatpush1.msra.mxu0 %v56
    %1507 = vmatprep.subr.mxu0 0.0
    %1508 = vmatpush1.msra.mxu0 0.0
    %1509 = vmatprep.subr.mxu0 0.0
    %1510 = vmatpush1.msra.mxu0 0.0
    %1511 = vmatprep.subr.mxu0 0.0
    %1512 = vmatpush1.msra.mxu0 0.0
    %1513 = vmatprep.subr.mxu0 0.0
    %1514 = vmatpush1.msra.mxu0 0.0
    %1515 = vmatprep.subr.mxu0 0.0
    %1516 = vmatpush1.msra.mxu0 0.0
    %1517 = vmatprep.subr.mxu0 0.0
    %1518 = vmatpush1.msra.mxu0 0.0
    %1519 = vmatprep.subr.mxu0 0.0
    %1520 = vmatpush1.msra.mxu0 0.0
    %1521 = vmatprep.subr.mxu0 0.0
    %1522 = vmatpush1.msra.mxu0 0.0
    %1523 = vmatprep.subr.mxu0 0.0
    %1524 = vmatpush1.msra.mxu0 0.0
    %1525 = vmatprep.subr.mxu0 0.0
    %1526 = vmatpush1.msra.mxu0 0.0
    %1527 = vmatprep.subr.mxu0 0.0
    %1528 = vmatpush1.msra.mxu0 0.0
    %1529 = vmatprep.subr.mxu0 0.0
    %1530 = vmatpush1.msra.mxu0 0.0
    %1531 = vmatprep.subr.mxu0 0.0
    %1532 = vmatpush1.msra.mxu0 0.0
    %1533 = vmatprep.subr.mxu0 0.0
    %1534 = vmatpush1.msra.mxu0 0.0
    %1535 = vmatprep.subr.mxu0 0.0
    %1536 = vmatpush1.msra.mxu0 0.0
    %1537 = vmatprep.subr.mxu0 0.0
    %1538 = vmatpush1.msra.mxu0 0.0
    %1539 = vmatprep.subr.mxu0 0.0
    %1540 = vmatpush1.msra.mxu0 0.0
    %1541 = vmatprep.subr.mxu0 0.0
    %1542 = vmatpush1.msra.mxu0 0.0
    %1543 = vmatprep.subr.mxu0 0.0
    %1544 = vmatpush1.msra.mxu0 0.0
    %1545 = vmatprep.subr.mxu0 0.0
    %1546 = vmatpush1.msra.mxu0 0.0
    %1547 = vmatprep.subr.mxu0 0.0
    %1548 = vmatpush1.msra.mxu0 0.0
    %1549 = vmatprep.subr.mxu0 0.0
    %1550 = vmatpush1.msra.mxu0 0.0
    %1551 = vmatprep.subr.mxu0 0.0
    %1552 = vmatpush1.msra.mxu0 0.0
    %1553 = vmatprep.subr.mxu0 0.0
    %1554 = vmatpush1.msra.mxu0 0.0
    %1555 = vmatprep.mubr.f32.mxu0 0.0
    %1556 = vmatmul.mubr.f32.gmra.mrb[0].mxu0 %v1489
    %v1557 = vpop.f32.mrb[0].mxu0
    %v1558 = vadd.f32 %v158, %v1557
    %v1559 = vpop.f32.mrb[0].mxu0
    %1560 = vdwg.mxu0
    %v1561 = vxor.u32 %v1558, 2147483648
    %v1562 = vmul.f32 %v1561, 1.442695
    %v1563 = vpow.pop %v1562
    %v1564 = vadd.f32 %v1563, 1.0
    %v1565 = vrcp.pop %v1564
    %v1566 = vmul.f32 1.0, %v1565
    %v1567 = vtanh.pop %v1558
    %v1568 = vmul.f32 %v1566, %v1374
    %1570 = vrot.lane.b32.xlu0 %v1567, 32
    %v1571 = vpop.permute.xlu0 %1570
    %v1573 = vmul.f32 %v1566, %v1571
    %1575 = vrot.lane.b32.xlu0 %v1573, 32
    %v1576 = vpop.permute.xlu0 %1575
    %v1578 = vadd.f32 %v1568, %v1576
    %v1579 = vtanh.pop %v1578
    %1581 = vrot.lane.b32.xlu0 %v1579, 32
    %v1582 = vpop.permute.xlu0 %1581
    %v1584 = vmul.f32 %v1566, %v1582
    %v1585 = vrot.slane %v150, 6
    %v1587 = vsel %vm160, %v1481, 0
    %1589 = vmatprep.subr.mxu0 0.0
    %1590 = vmatpush1.msra.mxu0 %v45
    %1591 = vmatprep.subr.mxu0 0.0
    %1592 = vmatpush1.msra.mxu0 %v46
    %1593 = vmatprep.subr.mxu0 0.0
    %1594 = vmatpush1.msra.mxu0 %v47
    %1595 = vmatprep.subr.mxu0 0.0
    %1596 = vmatpush1.msra.mxu0 %v48
    %1597 = vmatprep.subr.mxu0 0.0
    %1598 = vmatpush1.msra.mxu0 0.0
    %1599 = vmatprep.subr.mxu0 0.0
    %1600 = vmatpush1.msra.mxu0 0.0
    %1601 = vmatprep.subr.mxu0 0.0
    %1602 = vmatpush1.msra.mxu0 0.0
    %1603 = vmatprep.subr.mxu0 0.0
    %1604 = vmatpush1.msra.mxu0 0.0
    %1605 = vmatprep.subr.mxu0 0.0
    %1606 = vmatpush1.msra.mxu0 0.0
    %1607 = vmatprep.subr.mxu0 0.0
    %1608 = vmatpush1.msra.mxu0 0.0
    %1609 = vmatprep.subr.mxu0 0.0
    %1610 = vmatpush1.msra.mxu0 0.0
    %1611 = vmatprep.subr.mxu0 0.0
    %1612 = vmatpush1.msra.mxu0 0.0
    %1613 = vmatprep.subr.mxu0 0.0
    %1614 = vmatpush1.msra.mxu0 0.0
    %1615 = vmatprep.subr.mxu0 0.0
    %1616 = vmatpush1.msra.mxu0 0.0
    %1617 = vmatprep.subr.mxu0 0.0
    %1618 = vmatpush1.msra.mxu0 0.0
    %1619 = vmatprep.subr.mxu0 0.0
    %1620 = vmatpush1.msra.mxu0 0.0
    %1621 = vmatprep.subr.mxu0 0.0
    %1622 = vmatpush1.msra.mxu0 0.0
    %1623 = vmatprep.subr.mxu0 0.0
    %1624 = vmatpush1.msra.mxu0 0.0
    %1625 = vmatprep.subr.mxu0 0.0
    %1626 = vmatpush1.msra.mxu0 0.0
    %1627 = vmatprep.subr.mxu0 0.0
    %1628 = vmatpush1.msra.mxu0 0.0
    %1629 = vmatprep.subr.mxu0 0.0
    %1630 = vmatpush1.msra.mxu0 0.0
    %1631 = vmatprep.subr.mxu0 0.0
    %1632 = vmatpush1.msra.mxu0 0.0
    %1633 = vmatprep.subr.mxu0 0.0
    %1634 = vmatpush1.msra.mxu0 0.0
    %1635 = vmatprep.subr.mxu0 0.0
    %1636 = vmatpush1.msra.mxu0 0.0
    %1637 = vmatprep.subr.mxu0 0.0
    %1638 = vmatpush1.msra.mxu0 0.0
    %1639 = vmatprep.subr.mxu0 0.0
    %1640 = vmatpush1.msra.mxu0 0.0
    %1641 = vmatprep.subr.mxu0 0.0
    %1642 = vmatpush1.msra.mxu0 0.0
    %1643 = vmatprep.subr.mxu0 0.0
    %1644 = vmatpush1.msra.mxu0 0.0
    %1645 = vmatprep.subr.mxu0 0.0
    %1646 = vmatpush1.msra.mxu0 0.0
    %1647 = vmatprep.subr.mxu0 0.0
    %1648 = vmatpush1.msra.mxu0 0.0
    %1649 = vmatprep.subr.mxu0 0.0
    %1650 = vmatpush1.msra.mxu0 0.0
    %1651 = vmatprep.subr.mxu0 0.0
    %1652 = vmatpush1.msra.mxu0 0.0
    %1653 = vmatprep.mubr.f32.mxu0 0.0
    %1654 = vmatmul.mubr.f32.gmra.mrb[0].mxu0 %v1587
    %v1655 = vpop.f32.mrb[0].mxu0
    %v1656 = vadd.f32 %v1585, %v1655
    %v1657 = vpop.f32.mrb[0].mxu0
    %1658 = vdwg.mxu0
    %v1659 = vxor.u32 %v1656, 2147483648
    %v1660 = vmul.f32 %v1659, 1.442695
    %v1661 = vpow.pop %v1660
    %v1662 = vadd.f32 %v1661, 1.0
    %v1663 = vrcp.pop %v1662
    %v1664 = vmul.f32 1.0, %v1663
    %v1665 = vtanh.pop %v1656
    %v1666 = vmul.f32 %v1664, %v1472
    %1668 = vrot.lane.b32.xlu0 %v1665, 32
    %v1669 = vpop.permute.xlu0 %1668
    %v1671 = vmul.f32 %v1664, %v1669
    %1673 = vrot.lane.b32.xlu0 %v1671, 32
    %v1674 = vpop.permute.xlu0 %1673
    %v1676 = vadd.f32 %v1666, %v1674
    %v1677 = vtanh.pop %v1676
    %1679 = vrot.lane.b32.xlu0 %v1677, 32
    %v1680 = vpop.permute.xlu0 %1679
    %v1682 = vmul.f32 %v1664, %v1680
    %1684 = vrot.lane.b32.xlu0 %v1682, 64
    %v1685 = vpop.permute.xlu0 %1684
    %1688 = vrot.lane.b32.xlu0 %v1584, 96
    %v1689 = vpop.permute.xlu0 %1688
    %v1691 = vsel %vm160, %v1685, %v1689
    %v1693 = vsel %vm263, %v1691, 0
    %1695 = vmatprep.subr.mxu0 0.0
    %1696 = vmatpush1.msra.mxu0 %v49
    %1697 = vmatprep.subr.mxu0 0.0
    %1698 = vmatpush1.msra.mxu0 %v50
    %1699 = vmatprep.subr.mxu0 0.0
    %1700 = vmatpush1.msra.mxu0 %v51
    %1701 = vmatprep.subr.mxu0 0.0
    %1702 = vmatpush1.msra.mxu0 %v52
    %1703 = vmatprep.subr.mxu0 0.0
    %1704 = vmatpush1.msra.mxu0 %v53
    %1705 = vmatprep.subr.mxu0 0.0
    %1706 = vmatpush1.msra.mxu0 %v54
    %1707 = vmatprep.subr.mxu0 0.0
    %1708 = vmatpush1.msra.mxu0 %v55
    %1709 = vmatprep.subr.mxu0 0.0
    %1710 = vmatpush1.msra.mxu0 %v56
    %1711 = vmatprep.subr.mxu0 0.0
    %1712 = vmatpush1.msra.mxu0 0.0
    %1713 = vmatprep.subr.mxu0 0.0
    %1714 = vmatpush1.msra.mxu0 0.0
    %1715 = vmatprep.subr.mxu0 0.0
    %1716 = vmatpush1.msra.mxu0 0.0
    %1717 = vmatprep.subr.mxu0 0.0
    %1718 = vmatpush1.msra.mxu0 0.0
    %1719 = vmatprep.subr.mxu0 0.0
    %1720 = vmatpush1.msra.mxu0 0.0
    %1721 = vmatprep.subr.mxu0 0.0
    %1722 = vmatpush1.msra.mxu0 0.0
    %1723 = vmatprep.subr.mxu0 0.0
    %1724 = vmatpush1.msra.mxu0 0.0
    %1725 = vmatprep.subr.mxu0 0.0
    %1726 = vmatpush1.msra.mxu0 0.0
    %1727 = vmatprep.subr.mxu0 0.0
    %1728 = vmatpush1.msra.mxu0 0.0
    %1729 = vmatprep.subr.mxu0 0.0
    %1730 = vmatpush1.msra.mxu0 0.0
    %1731 = vmatprep.subr.mxu0 0.0
    %1732 = vmatpush1.msra.mxu0 0.0
    %1733 = vmatprep.subr.mxu0 0.0
    %1734 = vmatpush1.msra.mxu0 0.0
    %1735 = vmatprep.subr.mxu0 0.0
    %1736 = vmatpush1.msra.mxu0 0.0
    %1737 = vmatprep.subr.mxu0 0.0
    %1738 = vmatpush1.msra.mxu0 0.0
    %1739 = vmatprep.subr.mxu0 0.0
    %1740 = vmatpush1.msra.mxu0 0.0
    %1741 = vmatprep.subr.mxu0 0.0
    %1742 = vmatpush1.msra.mxu0 0.0
    %1743 = vmatprep.subr.mxu0 0.0
    %1744 = vmatpush1.msra.mxu0 0.0
    %1745 = vmatprep.subr.mxu0 0.0
    %1746 = vmatpush1.msra.mxu0 0.0
    %1747 = vmatprep.subr.mxu0 0.0
    %1748 = vmatpush1.msra.mxu0 0.0
    %1749 = vmatprep.subr.mxu0 0.0
    %1750 = vmatpush1.msra.mxu0 0.0
    %1751 = vmatprep.subr.mxu0 0.0
    %1752 = vmatpush1.msra.mxu0 0.0
    %1753 = vmatprep.subr.mxu0 0.0
    %1754 = vmatpush1.msra.mxu0 0.0
    %1755 = vmatprep.subr.mxu0 0.0
    %1756 = vmatpush1.msra.mxu0 0.0
    %1757 = vmatprep.subr.mxu0 0.0
    %1758 = vmatpush1.msra.mxu0 0.0
    %1759 = vmatprep.mubr.f32.mxu0 0.0
    %1760 = vmatmul.mubr.f32.gmra.mrb[0].mxu0 %v1693
    %v1761 = vpop.f32.mrb[0].mxu0
    %v1762 = vadd.f32 %v158, %v1761
    %v1763 = vpop.f32.mrb[0].mxu0
    %1764 = vdwg.mxu0
    %v1765 = vxor.u32 %v1762, 2147483648
    %v1766 = vmul.f32 %v1765, 1.442695
    %v1767 = vpow.pop %v1766
    %v1768 = vadd.f32 %v1767, 1.0
    %v1769 = vrcp.pop %v1768
    %v1770 = vmul.f32 1.0, %v1769
    %v1771 = vtanh.pop %v1762
    %v1772 = vmul.f32 %v1770, %v1578
    %1774 = vrot.lane.b32.xlu0 %v1771, 32
    %v1775 = vpop.permute.xlu0 %1774
    %v1777 = vmul.f32 %v1770, %v1775
    %1779 = vrot.lane.b32.xlu0 %v1777, 32
    %v1780 = vpop.permute.xlu0 %1779
    %v1782 = vadd.f32 %v1772, %v1780
    %v1783 = vtanh.pop %v1782
    %1785 = vrot.lane.b32.xlu0 %v1783, 32
    %v1786 = vpop.permute.xlu0 %1785
    %v1788 = vmul.f32 %v1770, %v1786
    %v1789 = vld [vmem:[%s6] sm:$0xff]
    %v1790 = vld [vmem:[%s6 + $0x8] sm:$0xff]
    %v1791 = vld [vmem:[%s6 + $0x10] sm:$0xff]
    %v1792 = vld [vmem:[%s6 + $0x18] sm:$0xff]
    %v1793 = vld [vmem:[#allocation2] sm:$0x1]
    %v1795 = vlaneseq
    %v1796 = vshrl.u32 %v1795, 7
    %v1797 = vsub.s32 0, %v1796
    %v1798 = vrot.slane %v1793, %v1797
    %1801 = vrot.lane.b32.xlu0 %v1788, 64
    %v1802 = vpop.permute.xlu0 %1801
    %v1803 = vsel %vm160, %v1802, 0
    %1805 = vmatprep.subr.mxu0 0.0
    %1806 = vmatpush1.msra.mxu0 %v1789
    %1807 = vmatprep.subr.mxu0 0.0
    %1808 = vmatpush1.msra.mxu0 %v1790
    %1809 = vmatprep.subr.mxu0 0.0
    %1810 = vmatpush1.msra.mxu0 %v1791
    %1811 = vmatprep.subr.mxu0 0.0
    %1812 = vmatpush1.msra.mxu0 %v1792
    %1813 = vmatprep.subr.mxu0 0.0
    %1814 = vmatpush1.msra.mxu0 0.0
    %1815 = vmatprep.subr.mxu0 0.0
    %1816 = vmatpush1.msra.mxu0 0.0
    %1817 = vmatprep.subr.mxu0 0.0
    %1818 = vmatpush1.msra.mxu0 0.0
    %1819 = vmatprep.subr.mxu0 0.0
    %1820 = vmatpush1.msra.mxu0 0.0
    %1821 = vmatprep.subr.mxu0 0.0
    %1822 = vmatpush1.msra.mxu0 0.0
    %1823 = vmatprep.subr.mxu0 0.0
    %1824 = vmatpush1.msra.mxu0 0.0
    %1825 = vmatprep.subr.mxu0 0.0
    %1826 = vmatpush1.msra.mxu0 0.0
    %1827 = vmatprep.subr.mxu0 0.0
    %1828 = vmatpush1.msra.mxu0 0.0
    %1829 = vmatprep.subr.mxu0 0.0
    %1830 = vmatpush1.msra.mxu0 0.0
    %1831 = vmatprep.subr.mxu0 0.0
    %1832 = vmatpush1.msra.mxu0 0.0
    %1833 = vmatprep.subr.mxu0 0.0
    %1834 = vmatpush1.msra.mxu0 0.0
    %1835 = vmatprep.subr.mxu0 0.0
    %1836 = vmatpush1.msra.mxu0 0.0
    %1837 = vmatprep.subr.mxu0 0.0
    %1838 = vmatpush1.msra.mxu0 0.0
    %1839 = vmatprep.subr.mxu0 0.0
    %1840 = vmatpush1.msra.mxu0 0.0
    %1841 = vmatprep.subr.mxu0 0.0
    %1842 = vmatpush1.msra.mxu0 0.0
    %1843 = vmatprep.subr.mxu0 0.0
    %1844 = vmatpush1.msra.mxu0 0.0
    %1845 = vmatprep.subr.mxu0 0.0
    %1846 = vmatpush1.msra.mxu0 0.0
    %1847 = vmatprep.subr.mxu0 0.0
    %1848 = vmatpush1.msra.mxu0 0.0
    %1849 = vmatprep.subr.mxu0 0.0
    %1850 = vmatpush1.msra.mxu0 0.0
    %1851 = vmatprep.subr.mxu0 0.0
    %1852 = vmatpush1.msra.mxu0 0.0
    %1853 = vmatprep.subr.mxu0 0.0
    %1854 = vmatpush1.msra.mxu0 0.0
    %1855 = vmatprep.subr.mxu0 0.0
    %1856 = vmatpush1.msra.mxu0 0.0
    %1857 = vmatprep.subr.mxu0 0.0
    %1858 = vmatpush1.msra.mxu0 0.0
    %1859 = vmatprep.subr.mxu0 0.0
    %1860 = vmatpush1.msra.mxu0 0.0
    %1861 = vmatprep.subr.mxu0 0.0
    %1862 = vmatpush1.msra.mxu0 0.0
    %1863 = vmatprep.subr.mxu0 0.0
    %1864 = vmatpush1.msra.mxu0 0.0
    %1865 = vmatprep.subr.mxu0 0.0
    %1866 = vmatpush1.msra.mxu0 0.0
    %1867 = vmatprep.subr.mxu0 0.0
    %1868 = vmatpush1.msra.mxu0 0.0
    %1869 = vmatprep.mubr.f32.mxu0 0.0
    %1870 = vmatmul.mubr.f32.gmra.mrb[0].mxu0 %v1803
    %v1871 = vpop.f32.mrb[0].mxu0
    %v1872 = vadd.f32 %v1798, %v1871
    %v1873 = vpop.f32.mrb[0].mxu0
    %1874 = vdwg.mxu0
    %vm1875 = vcmask 1024
    %1876 = vst.msk [vmem:[%s8] sm:$0x3] %vm1875, %v1872
    // Predicated region
    $region38: #{tpu_custom_call.1} parent=1 // pred_check
      _
    $region39: #{tpu_custom_call.1} parent=1 // pred_check_branch
      %1878 = sbr.rel (0) target = $region41
    $region40: #{tpu_custom_call.1} parent=1 // pred_region
      _
    $region41: #{tpu_custom_call.1} parent=1 // pred_fallthru
      _
    // Predicated region
    $region42: #{tpu_custom_call.1} parent=1 // pred_check
      _
    $region43: #{tpu_custom_call.1} parent=1 // pred_check_branch
      %1880 = sbr.rel (0) target = $region45
    $region44: #{tpu_custom_call.1} parent=1 // pred_region
      _
    $region45: #{tpu_custom_call.1} parent=1 // pred_fallthru
      _
    %1881 = vsyncpa [#allocation4], 1

</llo_original>
